<compile_context>
chip_gen: v6e
topology: v6e:2x2x1
jax: 0.10.0
libtpu: 0.0.40
codegen_flags: <defaults>
</compile_context>

<pallas_src>
import jax
import jax.numpy as jnp
from jax.experimental import pallas as pl
from jax.experimental.pallas import tpu as pltpu

EPS = 1e-5

# bf16 weights at or below this size stay fully VMEM-resident in the fused /
# linear kernels (ViT-Base/Large MLP weights are ~4.5 / 8 MiB).
_RESIDENT_W_BYTES = 12 * 1024 * 1024


# ------------------------------ tiling helpers -------------------------------
def _round_up(n, m):
    return ((n + m - 1) // m) * m


def _row_tile(n_rows, max_rows):
    """Row-tile size: multiple of 8, <= max_rows, and >= 2 tiles when possible
    (so the "parallel" row axis can feed both v7x TensorCores)."""
    ts = min(max_rows, _round_up(n_rows, 8))
    if ts >= n_rows and n_rows > 8:
        ts = _round_up((n_rows + 1) // 2, 8)
    return ts


def _col_tile(h):
    """Lane-dense tile for the output H axis (prefer wide, unmasked stores)."""
    for tn in (512, 256, 128):
        if h % tn == 0:
            return tn
    return h  # small / ragged H: one full-extent block


def _vmem_limit(est_bytes):
    """Scoped-VMEM request: lift v5e's 16 MiB default, stay under v7x's 64 MiB."""
    return int(min(64 * 1024 * 1024, max(32 * 1024 * 1024, int(1.25 * est_bytes))))


# ----------------------- fused LayerNorm + Linear kernels ---------------------
def _prenorm_linear_resident_kernel(x_ref, g_ref, b_ref, w_ref, bias_ref, o_ref):
    # x_ref: (TS, D)  g/b: (1, D)  w_ref: (D, H) bf16 resident  bias: (1, H)
    x = x_ref[...].astype(jnp.float32)
    mean = jnp.mean(x, axis=-1, keepdims=True)
    var = jnp.mean((x - mean) * (x - mean), axis=-1, keepdims=True)
    y = (x - mean) * jax.lax.rsqrt(var + EPS)
    y = y * g_ref[...].astype(jnp.float32) + b_ref[...].astype(jnp.float32)
    acc = jnp.dot(y.astype(jnp.bfloat16), w_ref[...],
                  preferred_element_type=jnp.float32)
    acc = acc + bias_ref[...].astype(jnp.float32)
    o_ref[...] = acc.astype(o_ref.dtype)


def _prenorm_linear_tiled_kernel(x_ref, g_ref, b_ref, w_ref, bias_ref, o_ref,
                                 y_ref):
    # LayerNorm runs once per row tile (j == 0) and is carried in a bf16 VMEM
    # scratch for all H tiles -> no per-H-tile LN recompute.
    @pl.when(pl.program_id(1) == 0)
    def _():
        x = x_ref[...].astype(jnp.float32)
        mean = jnp.mean(x, axis=-1, keepdims=True)
        var = jnp.mean((x - mean) * (x - mean), axis=-1, keepdims=True)
        y = (x - mean) * jax.lax.rsqrt(var + EPS)
        y = y * g_ref[...].astype(jnp.float32) + b_ref[...].astype(jnp.float32)
        y_ref[...] = y.astype(y_ref.dtype)

    acc = jnp.dot(y_ref[...], w_ref[...], preferred_element_type=jnp.float32)
    acc = acc + bias_ref[...].astype(jnp.float32)
    o_ref[...] = acc.astype(o_ref.dtype)


def prenorm_linear(x, gamma, beta, w, bias, *, max_rows=512, col_tile=None,
                   resident_w_bytes=_RESIDENT_W_BYTES):
    """fn(LayerNorm(x)) with fn = Linear(w, bias), fused into one kernel."""
    B, S, D = x.shape
    H = w.shape[1]
    N = B * S
    xr = x.reshape(N, D)
    w = w.astype(jnp.bfloat16)                    # bf16 MXU operand
    gamma = gamma.reshape(1, D)
    beta = beta.reshape(1, D)
    bias = bias.reshape(1, H).astype(jnp.float32)

    TS = _row_tile(N, max_rows)
    nr = pl.cdiv(N, TS)
    out_shape = jax.ShapeDtypeStruct((N, H), x.dtype)
    itm_x = xr.dtype.itemsize
    itm_o = x.dtype.itemsize

    if D * H * 2 <= resident_w_bytes:
        # Weight fully VMEM-resident; single grid axis over row tiles.
        est = (2 * TS * D * itm_x + 2 * TS * H * itm_o
               + 2 * D * H * 2 + 8 * (D + H) * 4)

        def call(single_buffer_w):
            w_spec = (pl.BlockSpec((D, H), lambda i: (0, 0),
                                   pipeline_mode=pl.Buffered(1))
                      if single_buffer_w
                      else pl.BlockSpec((D, H), lambda i: (0, 0)))
            return pl.pallas_call(
                _prenorm_linear_resident_kernel,
                out_shape=out_shape,
                grid=(nr,),
                in_specs=[
                    pl.BlockSpec((TS, D), lambda i: (i, 0)),   # x row tile
                    pl.BlockSpec((1, D), lambda i: (0, 0)),    # gamma
                    pl.BlockSpec((1, D), lambda i: (0, 0)),    # beta
                    w_spec,                                    # resident W
                    pl.BlockSpec((1, H), lambda i: (0, 0)),    # bias
                ],
                out_specs=pl.BlockSpec((TS, H), lambda i: (i, 0)),
                compiler_params=pltpu.CompilerParams(
                    dimension_semantics=("parallel",),
                    vmem_limit_bytes=_vmem_limit(est)),
            )(xr, gamma, beta, w, bias)

        try:
            # Constant-index weight never changes -> single buffer saves VMEM
            # (matters most under v7x's 64 MiB VMEM).
            out = call(True)
        except Exception:
            # pl.Buffered(1) not supported by this jax version: default buffering.
            out = call(False)
        return out.reshape(B, S, H)

    # Large-H fallback: tile H ("arbitrary", innermost) and carry the
    # normalized activations in a bf16 VMEM scratch.
    TN = col_tile or _col_tile(H)
    nc = pl.cdiv(H, TN)
    est = (2 * TS * D * itm_x + 2 * TS * TN * itm_o + 2 * D * TN * 2
           + TS * D * 2 + 8 * (D + TN) * 4)
    out = pl.pallas_call(
        _prenorm_linear_tiled_kernel,
        out_shape=out_shape,
        grid=(nr, nc),
        in_specs=[
            pl.BlockSpec((TS, D), lambda i, j: (i, 0)),    # x (constant over j)
            pl.BlockSpec((1, D), lambda i, j: (0, 0)),     # gamma
            pl.BlockSpec((1, D), lambda i, j: (0, 0)),     # beta
            pl.BlockSpec((D, TN), lambda i, j: (0, j)),    # W column tile
            pl.BlockSpec((1, TN), lambda i, j: (0, j)),    # bias column tile
        ],
        out_specs=pl.BlockSpec((TS, TN), lambda i, j: (i, j)),
        scratch_shapes=[pltpu.VMEM((TS, D), jnp.bfloat16)],
        compiler_params=pltpu.CompilerParams(
            dimension_semantics=("parallel", "arbitrary"),
            vmem_limit_bytes=_vmem_limit(est)),
    )(xr, gamma, beta, w, bias)
    return out.reshape(B, S, H)


# ------------------------ standalone LayerNorm kernel -------------------------
def _layernorm_kernel(x_ref, g_ref, b_ref, o_ref):
    x = x_ref[...].astype(jnp.float32)                    # (TS, D)
    mean = jnp.mean(x, axis=-1, keepdims=True)
    var = jnp.mean((x - mean) * (x - mean), axis=-1, keepdims=True)
    y = (x - mean) * jax.lax.rsqrt(var + EPS)
    y = y * g_ref[...].astype(jnp.float32) + b_ref[...].astype(jnp.float32)
    o_ref[...] = y.astype(o_ref.dtype)


def layer_norm(x, gamma, beta, *, max_rows=1024):
    B, S, D = x.shape
    N = B * S
    xr = x.reshape(N, D)
    TS = _row_tile(N, max_rows)
    nr = pl.cdiv(N, TS)
    est = 4 * TS * D * xr.dtype.itemsize + 8 * D * 4
    out = pl.pallas_call(
        _layernorm_kernel,
        out_shape=jax.ShapeDtypeStruct((N, D), x.dtype),
        grid=(nr,),
        in_specs=[
            pl.BlockSpec((TS, D), lambda i: (i, 0)),
            pl.BlockSpec((1, D), lambda i: (0, 0)),
            pl.BlockSpec((1, D), lambda i: (0, 0)),
        ],
        out_specs=pl.BlockSpec((TS, D), lambda i: (i, 0)),
        compiler_params=pltpu.CompilerParams(
            dimension_semantics=("parallel",),
            vmem_limit_bytes=_vmem_limit(est)),
    )(xr, gamma.reshape(1, D), beta.reshape(1, D))
    return out.reshape(B, S, D)


# -------------------------- standalone Linear kernel --------------------------
def _linear_kernel(x_ref, w_ref, bias_ref, o_ref):
    acc = jnp.dot(x_ref[...].astype(jnp.bfloat16), w_ref[...],
                  preferred_element_type=jnp.float32)
    acc = acc + bias_ref[...].astype(jnp.float32)
    o_ref[...] = acc.astype(o_ref.dtype)


def linear(x, w, bias, *, max_rows=512, resident_w_bytes=_RESIDENT_W_BYTES):
    B, S, D = x.shape
    H = w.shape[1]
    N = B * S
    xr = x.reshape(N, D)
    w = w.astype(jnp.bfloat16)
    bias = bias.reshape(1, H).astype(jnp.float32)
    TS = _row_tile(N, max_rows)
    nr = pl.cdiv(N, TS)
    itm_x = xr.dtype.itemsize
    itm_o = x.dtype.itemsize

    if D * H * 2 <= resident_w_bytes:
        est = 2 * TS * D * itm_x + 2 * TS * H * itm_o + 2 * D * H * 2 + 8 * H * 4
        out = pl.pallas_call(
            _linear_kernel,
            out_shape=jax.ShapeDtypeStruct((N, H), x.dtype),
            grid=(nr,),
            in_specs=[
                pl.BlockSpec((TS, D), lambda i: (i, 0)),
                pl.BlockSpec((D, H), lambda i: (0, 0)),     # resident W
                pl.BlockSpec((1, H), lambda i: (0, 0)),
            ],
            out_specs=pl.BlockSpec((TS, H), lambda i: (i, 0)),
            compiler_params=pltpu.CompilerParams(
                dimension_semantics=("parallel",),
                vmem_limit_bytes=_vmem_limit(est)),
        )(xr, w, bias)
    else:
        TN = _col_tile(H)
        nc = pl.cdiv(H, TN)
        est = (2 * TS * D * itm_x + 2 * TS * TN * itm_o + 2 * D * TN * 2
               + 8 * TN * 4)
        out = pl.pallas_call(
            _linear_kernel,
            out_shape=jax.ShapeDtypeStruct((N, H), x.dtype),
            grid=(nr, nc),
            in_specs=[
                pl.BlockSpec((TS, D), lambda i, j: (i, 0)),
                pl.BlockSpec((D, TN), lambda i, j: (0, j)),
                pl.BlockSpec((1, TN), lambda i, j: (0, j)),
            ],
            out_specs=pl.BlockSpec((TS, TN), lambda i, j: (i, j)),
            compiler_params=pltpu.CompilerParams(
                dimension_semantics=("parallel", "arbitrary"),
                vmem_limit_bytes=_vmem_limit(est)),
        )(xr, w, bias)
    return out.reshape(B, S, H)


# --------------------------------- modules ------------------------------------
class Linear:
    """y @ w + b as a Pallas kernel (bf16 MXU operands, f32 accumulation)."""

    def __init__(self, w, b):
        self.w = jnp.asarray(w, jnp.bfloat16)    # bf16-native MXU rate
        self.b = jnp.asarray(b, jnp.float32)

    def __call__(self, y):
        return linear(y, self.w, self.b)


class PreNorm:
    """out = fn(LayerNorm(x), **kwargs).

    If `fn` is the Pallas `Linear` above (typical ViT use), LayerNorm and the
    projection are fused into a single kernel with a VMEM-resident weight.
    For any other callable we fall back to the standalone row-tiled LayerNorm
    kernel followed by `fn`.
    """

    def __init__(self, dim, fn):
        # nn.LayerNorm default init: weight = 1, bias = 0
        self.gamma = jnp.ones((dim,), jnp.float32)
        self.beta = jnp.zeros((dim,), jnp.float32)
        self.fn = fn

    def __call__(self, x, **kwargs):
        if isinstance(self.fn, Linear) and not kwargs:
            return prenorm_linear(x, self.gamma, self.beta,
                                  self.fn.w, self.fn.b)
        # TODO(synk): arbitrary `fn` cannot be fused into the kernel; LN runs
        # as its own Pallas pass and `fn` is applied to its output.
        return self.fn(layer_norm(x, self.gamma, self.beta), **kwargs)


if __name__ == "__main__":
    # N = B*S = 130 -> exercises the masked (ragged) last row tile, no padding.
    B, S, D, H = 2, 65, 128, 256

    key = jax.random.PRNGKey(0)
    kx, kw, kb = jax.random.split(key, 3)
    x = jax.random.normal(kx, (B, S, D), jnp.float32)
    w = jax.random.normal(kw, (D, H), jnp.float32) * 0.02
    b = jax.random.normal(kb, (H,), jnp.float32) * 0.02

    # Fused path (VMEM-resident weight): fn is the Pallas Linear.
    prenorm = PreNorm(D, Linear(w, b))
    out = jax.block_until_ready(prenorm(x))

    # Fused path, forced large-H tiling (scratch-carried LayerNorm).
    out_tiled = jax.block_until_ready(
        prenorm_linear(x, prenorm.gamma, prenorm.beta, w, b,
                       col_tile=128, resident_w_bytes=0))

    # Generic path: fn is an opaque callable -> standalone LN kernel + fn.
    prenorm_generic = PreNorm(D, lambda y: linear(y, w, b))
    out_generic = jax.block_until_ready(prenorm_generic(x))

    # Plain-JAX reference (bf16-matched matmul operands, f32 stats/accumulate).
    mean = jnp.mean(x, axis=-1, keepdims=True)
    var = jnp.mean((x - mean) ** 2, axis=-1, keepdims=True)
    y_ref = (x - mean) * jax.lax.rsqrt(var + EPS)          # gamma = 1, beta = 0
    y_bf = y_ref.astype(jnp.bfloat16).astype(jnp.float32)
    w_bf = w.astype(jnp.bfloat16).astype(jnp.float32)
    ref = jnp.einsum("bsd,dh->bsh", y_bf, w_bf,
                     precision=jax.lax.Precision.HIGHEST) + b

    assert out.shape == (B, S, H)
    for got in (out, out_tiled, out_generic):
        assert jnp.allclose(got, ref, atol=2e-3, rtol=2e-3), float(
            jnp.max(jnp.abs(got - ref)))

    print("KERNEL_OK")
</pallas_src>

<mosaic_0001>
module attributes {stable_mosaic.version = 11 : i64} {
  func.func @_prenorm_linear_resident_kernel(%arg0: i32, %arg1: memref<72x128xf32, #tpu.memory_space<vmem>>, %arg2: memref<1x128xf32, #tpu.memory_space<vmem>>, %arg3: memref<1x128xf32, #tpu.memory_space<vmem>>, %arg4: memref<128x256xbf16, #tpu.memory_space<vmem>>, %arg5: memref<1x256xf32, #tpu.memory_space<vmem>>, %arg6: memref<72x256xf32, #tpu.memory_space<vmem>>) attributes {dimension_semantics = [#tpu.dimension_semantics<parallel>], iteration_bounds = array<i64: 2>, scalar_prefetch = 0 : i64, scratch_operands = 0 : i64, tpu.core_type = #tpu.core_type<tc>, window_params = [{transform_indices = @transform_0, window_bounds = array<i64: 72, 128>}, {pipeline_mode = #tpu.pipeline_mode<synchronous>, transform_indices = @transform_1, window_bounds = array<i64: 1, 128>}, {pipeline_mode = #tpu.pipeline_mode<synchronous>, transform_indices = @transform_2, window_bounds = array<i64: 1, 128>}, {pipeline_mode = #tpu.pipeline_mode<synchronous>, transform_indices = @transform_3, window_bounds = array<i64: 128, 256>}, {pipeline_mode = #tpu.pipeline_mode<synchronous>, transform_indices = @transform_4, window_bounds = array<i64: 1, 256>}, {transform_indices = @transform_5, window_bounds = array<i64: 72, 256>}]} {
    %c0 = arith.constant 0 : index
    %c0_0 = arith.constant 0 : index
    %0 = vector.load %arg1[%c0, %c0_0] : memref<72x128xf32, #tpu.memory_space<vmem>>, vector<72x128xf32>
    %cst = arith.constant dense<0.000000e+00> : vector<72xf32>
    %1 = vector.multi_reduction <add>, %0, %cst [1] : vector<72x128xf32> to vector<72xf32>
    %2 = vector.shape_cast %1 : vector<72xf32> to vector<72x1xf32>
    %cst_1 = arith.constant 1.280000e+02 : f32
    %3 = vector.broadcast %cst_1 : f32 to vector<72x1xf32>
    %4 = arith.divf %2, %3 : vector<72x1xf32>
    %5 = vector.broadcast %4 : vector<72x1xf32> to vector<72x128xf32>
    %6 = arith.subf %0, %5 : vector<72x128xf32>
    %7 = vector.broadcast %4 : vector<72x1xf32> to vector<72x128xf32>
    %8 = arith.subf %0, %7 : vector<72x128xf32>
    %9 = arith.mulf %6, %8 : vector<72x128xf32>
    %cst_2 = arith.constant dense<0.000000e+00> : vector<72xf32>
    %10 = vector.multi_reduction <add>, %9, %cst_2 [1] : vector<72x128xf32> to vector<72xf32>
    %11 = vector.shape_cast %10 : vector<72xf32> to vector<72x1xf32>
    %cst_3 = arith.constant 1.280000e+02 : f32
    %12 = vector.broadcast %cst_3 : f32 to vector<72x1xf32>
    %13 = arith.divf %11, %12 : vector<72x1xf32>
    %14 = vector.broadcast %4 : vector<72x1xf32> to vector<72x128xf32>
    %15 = arith.subf %0, %14 : vector<72x128xf32>
    %cst_4 = arith.constant 9.99999974E-6 : f32
    %16 = vector.broadcast %cst_4 : f32 to vector<72x1xf32>
    %17 = arith.addf %13, %16 : vector<72x1xf32>
    %18 = math.rsqrt %17 : vector<72x1xf32>
    %19 = vector.broadcast %18 : vector<72x1xf32> to vector<72x128xf32>
    %20 = arith.mulf %15, %19 : vector<72x128xf32>
    %c0_5 = arith.constant 0 : index
    %c0_6 = arith.constant 0 : index
    %21 = vector.load %arg2[%c0_5, %c0_6] : memref<1x128xf32, #tpu.memory_space<vmem>>, vector<1x128xf32>
    %22 = vector.broadcast %21 : vector<1x128xf32> to vector<72x128xf32>
    %23 = arith.mulf %20, %22 : vector<72x128xf32>
    %c0_7 = arith.constant 0 : index
    %c0_8 = arith.constant 0 : index
    %24 = vector.load %arg3[%c0_7, %c0_8] : memref<1x128xf32, #tpu.memory_space<vmem>>, vector<1x128xf32>
    %25 = vector.broadcast %24 : vector<1x128xf32> to vector<72x128xf32>
    %26 = arith.addf %23, %25 : vector<72x128xf32>
    %27 = arith.truncf %26 : vector<72x128xf32> to vector<72x128xbf16>
    %c0_9 = arith.constant 0 : index
    %c0_10 = arith.constant 0 : index
    %28 = vector.load %arg4[%c0_9, %c0_10] : memref<128x256xbf16, #tpu.memory_space<vmem>>, vector<128x256xbf16>
    %cst_11 = arith.constant dense<0.000000e+00> : vector<72x256xf32>
    %29 = tpu.matmul %27, %28, %cst_11 {dimension_numbers = #tpu.dot_dimension_numbers<[1], [0], [0], [1], [0, 0, 1, 1], [], []>} : vector<72x128xbf16>, vector<128x256xbf16>, vector<72x256xf32> -> vector<72x256xf32>
    %c0_12 = arith.constant 0 : index
    %c0_13 = arith.constant 0 : index
    %30 = vector.load %arg5[%c0_12, %c0_13] : memref<1x256xf32, #tpu.memory_space<vmem>>, vector<1x256xf32>
    %31 = vector.broadcast %30 : vector<1x256xf32> to vector<72x256xf32>
    %32 = arith.addf %29, %31 : vector<72x256xf32>
    %c0_14 = arith.constant 0 : index
    %c0_15 = arith.constant 0 : index
    %33 = vector.load %arg6[%c0_14, %c0_15] : memref<72x256xf32, #tpu.memory_space<vmem>>, vector<72x256xf32>
    tpu.vector_store %arg6[%c0_14, %c0_15], %32 {strides = array<i32>} : memref<72x256xf32, #tpu.memory_space<vmem>>, vector<72x256xf32>,
    return
  }
  func.func @transform_0(%arg0: i32) -> (i32, i32) {
    %c0_i32 = arith.constant 0 : i32
    %c0_i32_0 = arith.constant 0 : i32
    return %arg0, %c0_i32 : i32, i32
  }
  func.func @transform_1(%arg0: i32) -> (i32, i32) {
    %c0_i32 = arith.constant 0 : i32
    %c0_i32_0 = arith.constant 0 : i32
    %c0_i32_1 = arith.constant 0 : i32
    return %c0_i32, %c0_i32_0 : i32, i32
  }
  func.func @transform_2(%arg0: i32) -> (i32, i32) {
    %c0_i32 = arith.constant 0 : i32
    %c0_i32_0 = arith.constant 0 : i32
    %c0_i32_1 = arith.constant 0 : i32
    return %c0_i32, %c0_i32_0 : i32, i32
  }
  func.func @transform_3(%arg0: i32) -> (i32, i32) {
    %c0_i32 = arith.constant 0 : i32
    %c0_i32_0 = arith.constant 0 : i32
    %c0_i32_1 = arith.constant 0 : i32
    return %c0_i32, %c0_i32_0 : i32, i32
  }
  func.func @transform_4(%arg0: i32) -> (i32, i32) {
    %c0_i32 = arith.constant 0 : i32
    %c0_i32_0 = arith.constant 0 : i32
    %c0_i32_1 = arith.constant 0 : i32
    return %c0_i32, %c0_i32_0 : i32, i32
  }
  func.func @transform_5(%arg0: i32) -> (i32, i32) {
    %c0_i32 = arith.constant 0 : i32
    %c0_i32_0 = arith.constant 0 : i32
    return %arg0, %c0_i32 : i32, i32
  }
}

module attributes {stable_mosaic.version = 11 : i64} {
  func.func @_prenorm_linear_resident_kernel(%arg0: i32, %arg1: memref<72x128xf32, #tpu.memory_space<vmem>>, %arg2: memref<1x128xf32, #tpu.memory_space<vmem>>, %arg3: memref<1x128xf32, #tpu.memory_space<vmem>>, %arg4: memref<128x256xbf16, #tpu.memory_space<vmem>>, %arg5: memref<1x256xf32, #tpu.memory_space<vmem>>, %arg6: memref<72x256xf32, #tpu.memory_space<vmem>>) attributes {dimension_semantics = [#tpu.dimension_semantics<parallel>], iteration_bounds = array<i64: 2>, scalar_prefetch = 0 : i64, scratch_operands = 0 : i64, tpu.core_type = #tpu.core_type<tc>, window_params = [{transform_indices = @transform_0, window_bounds = array<i64: 72, 128>}, {pipeline_mode = #tpu.pipeline_mode<synchronous>, transform_indices = @transform_1, window_bounds = array<i64: 1, 128>}, {pipeline_mode = #tpu.pipeline_mode<synchronous>, transform_indices = @transform_2, window_bounds = array<i64: 1, 128>}, {pipeline_mode = #tpu.pipeline_mode<synchronous>, transform_indices = @transform_3, window_bounds = array<i64: 128, 256>}, {pipeline_mode = #tpu.pipeline_mode<synchronous>, transform_indices = @transform_4, window_bounds = array<i64: 1, 256>}, {transform_indices = @transform_5, window_bounds = array<i64: 72, 256>}]} {
    %c0 = arith.constant 0 : index
    %c0_0 = arith.constant 0 : index
    %0 = vector.load %arg1[%c0, %c0_0] : memref<72x128xf32, #tpu.memory_space<vmem>>, vector<72x128xf32>
    %cst = arith.constant dense<0.000000e+00> : vector<72xf32>
    %1 = vector.multi_reduction <add>, %0, %cst [1] : vector<72x128xf32> to vector<72xf32>
    %2 = vector.shape_cast %1 : vector<72xf32> to vector<72x1xf32>
    %cst_1 = arith.constant 1.280000e+02 : f32
    %3 = vector.broadcast %cst_1 : f32 to vector<72x1xf32>
    %4 = arith.divf %2, %3 : vector<72x1xf32>
    %5 = vector.broadcast %4 : vector<72x1xf32> to vector<72x128xf32>
    %6 = arith.subf %0, %5 : vector<72x128xf32>
    %7 = vector.broadcast %4 : vector<72x1xf32> to vector<72x128xf32>
    %8 = arith.subf %0, %7 : vector<72x128xf32>
    %9 = arith.mulf %6, %8 : vector<72x128xf32>
    %cst_2 = arith.constant dense<0.000000e+00> : vector<72xf32>
    %10 = vector.multi_reduction <add>, %9, %cst_2 [1] : vector<72x128xf32> to vector<72xf32>
    %11 = vector.shape_cast %10 : vector<72xf32> to vector<72x1xf32>
    %cst_3 = arith.constant 1.280000e+02 : f32
    %12 = vector.broadcast %cst_3 : f32 to vector<72x1xf32>
    %13 = arith.divf %11, %12 : vector<72x1xf32>
    %14 = vector.broadcast %4 : vector<72x1xf32> to vector<72x128xf32>
    %15 = arith.subf %0, %14 : vector<72x128xf32>
    %cst_4 = arith.constant 9.99999974E-6 : f32
    %16 = vector.broadcast %cst_4 : f32 to vector<72x1xf32>
    %17 = arith.addf %13, %16 : vector<72x1xf32>
    %18 = math.rsqrt %17 : vector<72x1xf32>
    %19 = vector.broadcast %18 : vector<72x1xf32> to vector<72x128xf32>
    %20 = arith.mulf %15, %19 : vector<72x128xf32>
    %c0_5 = arith.constant 0 : index
    %c0_6 = arith.constant 0 : index
    %21 = vector.load %arg2[%c0_5, %c0_6] : memref<1x128xf32, #tpu.memory_space<vmem>>, vector<1x128xf32>
    %22 = vector.broadcast %21 : vector<1x128xf32> to vector<72x128xf32>
    %23 = arith.mulf %20, %22 : vector<72x128xf32>
    %c0_7 = arith.constant 0 : index
    %c0_8 = arith.constant 0 : index
    %24 = vector.load %arg3[%c0_7, %c0_8] : memref<1x128xf32, #tpu.memory_space<vmem>>, vector<1x128xf32>
    %25 = vector.broadcast %24 : vector<1x128xf32> to vector<72x128xf32>
    %26 = arith.addf %23, %25 : vector<72x128xf32>
    %27 = arith.truncf %26 : vector<72x128xf32> to vector<72x128xbf16>
    %c0_9 = arith.constant 0 : index
    %c0_10 = arith.constant 0 : index
    %28 = vector.load %arg4[%c0_9, %c0_10] : memref<128x256xbf16, #tpu.memory_space<vmem>>, vector<128x256xbf16>
    %cst_11 = arith.constant dense<0.000000e+00> : vector<72x256xf32>
    %29 = tpu.matmul %27, %28, %cst_11 {dimension_numbers = #tpu.dot_dimension_numbers<[1], [0], [0], [1], [0, 0, 1, 1], [], []>} : vector<72x128xbf16>, vector<128x256xbf16>, vector<72x256xf32> -> vector<72x256xf32>
    %c0_12 = arith.constant 0 : index
    %c0_13 = arith.constant 0 : index
    %30 = vector.load %arg5[%c0_12, %c0_13] : memref<1x256xf32, #tpu.memory_space<vmem>>, vector<1x256xf32>
    %31 = vector.broadcast %30 : vector<1x256xf32> to vector<72x256xf32>
    %32 = arith.addf %29, %31 : vector<72x256xf32>
    %c0_14 = arith.constant 0 : index
    %c0_15 = arith.constant 0 : index
    %33 = vector.load %arg6[%c0_14, %c0_15] : memref<72x256xf32, #tpu.memory_space<vmem>>, vector<72x256xf32>
    tpu.vector_store %arg6[%c0_14, %c0_15], %32 {strides = array<i32>} : memref<72x256xf32, #tpu.memory_space<vmem>>, vector<72x256xf32>,
    return
  }
  func.func @transform_0(%arg0: i32) -> (i32, i32) {
    %c0_i32 = arith.constant 0 : i32
    %c0_i32_0 = arith.constant 0 : i32
    return %arg0, %c0_i32 : i32, i32
  }
  func.func @transform_1(%arg0: i32) -> (i32, i32) {
    %c0_i32 = arith.constant 0 : i32
    %c0_i32_0 = arith.constant 0 : i32
    %c0_i32_1 = arith.constant 0 : i32
    return %c0_i32, %c0_i32_0 : i32, i32
  }
  func.func @transform_2(%arg0: i32) -> (i32, i32) {
    %c0_i32 = arith.constant 0 : i32
    %c0_i32_0 = arith.constant 0 : i32
    %c0_i32_1 = arith.constant 0 : i32
    return %c0_i32, %c0_i32_0 : i32, i32
  }
  func.func @transform_3(%arg0: i32) -> (i32, i32) {
    %c0_i32 = arith.constant 0 : i32
    %c0_i32_0 = arith.constant 0 : i32
    %c0_i32_1 = arith.constant 0 : i32
    return %c0_i32, %c0_i32_0 : i32, i32
  }
  func.func @transform_4(%arg0: i32) -> (i32, i32) {
    %c0_i32 = arith.constant 0 : i32
    %c0_i32_0 = arith.constant 0 : i32
    %c0_i32_1 = arith.constant 0 : i32
    return %c0_i32, %c0_i32_0 : i32, i32
  }
  func.func @transform_5(%arg0: i32) -> (i32, i32) {
    %c0_i32 = arith.constant 0 : i32
    %c0_i32_0 = arith.constant 0 : i32
    return %arg0, %c0_i32 : i32, i32
  }
}

</mosaic_0001>

<llo_original>
// kernel: tpu_custom_call.1
$region0: #{tpu_custom_call.1}
  #allocation0 [shape = 'u32[]', space=smem, size = 0x4, offset = 0x4, fixed_abs, tag = 'smem constant byte address 0x4 - core index']
  #allocation1 [shape = 'u32[144,128]{1,0:T(1,128)}', space=vmem, size = 0x12000, scoped, tag = 'internal scratch']
  %s0 = inlined_call_operand.hbm [shape: f32[130,128], index: 0, kind: input, shape index: {}]
  %s1 = inlined_call_operand.vmem [shape: f32[1,128], index: 1, kind: input, shape index: {}]
  %s2 = inlined_call_operand.hbm [shape: f32[1,128], index: 2, kind: input, shape index: {}]
  %s3 = inlined_call_operand.hbm [shape: bf16[128,256], index: 3, kind: input, shape index: {}]
  %s4 = inlined_call_operand.vmem [shape: f32[1,256], index: 4, kind: input, shape index: {}]
  %s5 = inlined_call_operand.hbm [shape: f32[130,256], index: 5, kind: output, shape index: {}]
  %s6 = sld [smem:[#allocation0]]
  $region65: #{tpu_custom_call.1} parent=0
    _
  %s8 = ssub.s32 1, %s6
  %s9 = scalar_select 0, %s8, %s6
  $region1: #{tpu_custom_call.1} parent=0
    #allocation2 [shape = 'u8[73728]{0}', space=vmem, size = 0x12000, scoped, tag = 'input window, operand 0']
    #allocation3 [shape = 's32[2]{0}', space=sflag, size = 0x8, scoped, tag = 'scoped memory for tpu_custom_call.1']
    #allocation4 [shape = 's32[2]{0}', space=sflag, size = 0x8, scoped, tag = 'scoped memory for tpu_custom_call.1']
    #allocation5 [shape = 'u8[512]{0}', space=vmem, size = 0x400, scoped, tag = 'input window, operand 2, single buffered']
    #allocation6 [shape = 's32[1]{0}', space=sflag, size = 0x4, scoped, tag = 'scoped memory for tpu_custom_call.1']
    #allocation7 [shape = 'u8[65536]{0}', space=vmem, size = 0x10000, scoped, tag = 'input window, operand 3, single buffered']
    #allocation8 [shape = 'u8[147456]{0}', space=vmem, size = 0x24000, scoped, tag = 'output window, operand 0']
    %10 = vsyncpa [#allocation3], 0
    %s11 = scalar_lea.sflag [#allocation3], 1
    %12 = vsyncpa %s11, 0
    %13 = vsyncpa [#allocation6], 0
    %14 = vsyncpa [#allocation4], 0
    %s15 = scalar_lea.sflag [#allocation4], 1
    %16 = vsyncpa %s15, 0
    loop: start=0, step=1, limit=4
    $region2: #{tpu_custom_call.1} parent=1 // loop_pre_header
      _
    $region3: #{tpu_custom_call.1} parent=1 // loop_header
      %s18 = sphi 0, %s22
      %p19 = scmp.ge.s32.totalorder %s18, 4
      %s28 = sphi 0, %s30
      %s31 = sphi 0, %s28
      %s32 = sphi 0, %s31
      %s48 = sphi 0, %s32
      %s52 = sphi 0, %s52
      %s54 = sphi 0, %s52
      %s55 = sphi 0, %s54
      %s69 = sphi 0, %s55
      %s73 = sphi 0, %s73
      %s75 = sphi 0, %s73
      %s76 = sphi 0, %s75
      %s90 = sphi 0, %s76
      %s94 = sphi 0, %s94
      %s96 = sphi 0, %s94
      %s97 = sphi 0, %s96
      %s111 = sphi 0, %s97
      %s115 = sphi 0, %s115
      %s117 = sphi 0, %s115
      %s118 = sphi 0, %s117
      %s132 = sphi 0, %s118
      %s138 = sphi 0, %s140
      %s141 = sphi 0, %s138
      %s142 = sphi 0, %s141
      %s158 = sphi 0, %s142
    $region4: #{tpu_custom_call.1} parent=1 // loop_header_branch
      %21 = sbr.rel (%p19) target = $region8
    $region5: #{tpu_custom_call.1} parent=1 // loop_body
      %s23 = ssub.s32 %s18, 1
      %s24 = ssub.s32 %s18, 2
      %s25 = sadd.s32 %s18, 1
      %s26 = ssub.s32 %s18, %s25
      %p27 = scmp.eq.s32.totalorder %s26, 0
      %s29 = sadd.s32 %s28, 1
      %s30 = scalar_select %p27, %s28, %s29
      %p33 = pneg %p27
      %p34 = scmp.eq.s32.totalorder %s18, 1
      %p35 = por %p33, %p34
      %p36 = scmp.ne.s32.totalorder %s28, %s31
      %p37 = scmp.eq.s32.totalorder %s18, 0
      %p38 = por %p36, %p37
      %p39 = scmp.ne.s32.totalorder %s28, %s31
      %p40 = scmp.eq.s32.totalorder %s23, 1
      %p41 = por %p39, %p40
      %p42 = scmp.ne.s32.totalorder %s31, %s32
      %p43 = scmp.eq.s32.totalorder %s23, 0
      %p44 = por %p42, %p43
      %p45 = scmp.ne.s32.totalorder %s31, %s32
      %p46 = scmp.eq.s32.totalorder %s24, 1
      %p47 = por %p45, %p46
      %p49 = scmp.ne.s32.totalorder %s32, %s48
      %p50 = scmp.eq.s32.totalorder %s24, 0
      %p51 = por %p49, %p50
      %s53 = sadd.s32 %s52, 1
      %p56 = scmp.eq.s32.totalorder %s18, 1
      %p57 = scmp.ne.s32.totalorder %s52, %s54
      %p58 = scmp.eq.s32.totalorder %s18, 0
      %p59 = por %p57, %p58
      %p60 = scmp.ne.s32.totalorder %s52, %s54
      %p61 = scmp.eq.s32.totalorder %s23, 1
      %p62 = por %p60, %p61
      %p63 = scmp.ne.s32.totalorder %s54, %s55
      %p64 = scmp.eq.s32.totalorder %s23, 0
      %p65 = por %p63, %p64
      %p66 = scmp.ne.s32.totalorder %s54, %s55
      %p67 = scmp.eq.s32.totalorder %s24, 1
      %p68 = por %p66, %p67
      %p70 = scmp.ne.s32.totalorder %s55, %s69
      %p71 = scmp.eq.s32.totalorder %s24, 0
      %p72 = por %p70, %p71
      %s74 = sadd.s32 %s73, 1
      %p77 = scmp.eq.s32.totalorder %s18, 1
      %p78 = scmp.ne.s32.totalorder %s73, %s75
      %p79 = scmp.eq.s32.totalorder %s18, 0
      %p80 = por %p78, %p79
      %p81 = scmp.ne.s32.totalorder %s73, %s75
      %p82 = scmp.eq.s32.totalorder %s23, 1
      %p83 = por %p81, %p82
      %p84 = scmp.ne.s32.totalorder %s75, %s76
      %p85 = scmp.eq.s32.totalorder %s23, 0
      %p86 = por %p84, %p85
      %p87 = scmp.ne.s32.totalorder %s75, %s76
      %p88 = scmp.eq.s32.totalorder %s24, 1
      %p89 = por %p87, %p88
      %p91 = scmp.ne.s32.totalorder %s76, %s90
      %p92 = scmp.eq.s32.totalorder %s24, 0
      %p93 = por %p91, %p92
      %s95 = sadd.s32 %s94, 1
      %p98 = scmp.eq.s32.totalorder %s18, 1
      %p99 = scmp.ne.s32.totalorder %s94, %s96
      %p100 = scmp.eq.s32.totalorder %s18, 0
      %p101 = por %p99, %p100
      %p102 = scmp.ne.s32.totalorder %s94, %s96
      %p103 = scmp.eq.s32.totalorder %s23, 1
      %p104 = por %p102, %p103
      %p105 = scmp.ne.s32.totalorder %s96, %s97
      %p106 = scmp.eq.s32.totalorder %s23, 0
      %p107 = por %p105, %p106
      %p108 = scmp.ne.s32.totalorder %s96, %s97
      %p109 = scmp.eq.s32.totalorder %s24, 1
      %p110 = por %p108, %p109
      %p112 = scmp.ne.s32.totalorder %s97, %s111
      %p113 = scmp.eq.s32.totalorder %s24, 0
      %p114 = por %p112, %p113
      %s116 = sadd.s32 %s115, 1
      %p119 = scmp.eq.s32.totalorder %s18, 1
      %p120 = scmp.ne.s32.totalorder %s115, %s117
      %p121 = scmp.eq.s32.totalorder %s18, 0
      %p122 = por %p120, %p121
      %p123 = scmp.ne.s32.totalorder %s115, %s117
      %p124 = scmp.eq.s32.totalorder %s23, 1
      %p125 = por %p123, %p124
      %p126 = scmp.ne.s32.totalorder %s117, %s118
      %p127 = scmp.eq.s32.totalorder %s23, 0
      %p128 = por %p126, %p127
      %p129 = scmp.ne.s32.totalorder %s117, %s118
      %p130 = scmp.eq.s32.totalorder %s24, 1
      %p131 = por %p129, %p130
      %p133 = scmp.ne.s32.totalorder %s118, %s132
      %p134 = scmp.eq.s32.totalorder %s24, 0
      %p135 = por %p133, %p134
      %s136 = ssub.s32 %s18, %s25
      %p137 = scmp.eq.s32.totalorder %s136, 0
      %s139 = sadd.s32 %s138, 1
      %s140 = scalar_select %p137, %s138, %s139
      %p143 = pneg %p137
      %p144 = scmp.eq.s32.totalorder %s18, 1
      %p145 = por %p143, %p144
      %p146 = scmp.ne.s32.totalorder %s138, %s141
      %p147 = scmp.eq.s32.totalorder %s18, 0
      %p148 = por %p146, %p147
      %p149 = scmp.ne.s32.totalorder %s138, %s141
      %p150 = scmp.eq.s32.totalorder %s23, 1
      %p151 = por %p149, %p150
      %p152 = scmp.ne.s32.totalorder %s141, %s142
      %p153 = scmp.eq.s32.totalorder %s23, 0
      %p154 = por %p152, %p153
      %p155 = scmp.ne.s32.totalorder %s141, %s142
      %p156 = scmp.eq.s32.totalorder %s24, 1
      %p157 = por %p155, %p156
      %p159 = scmp.ne.s32.totalorder %s142, %s158
      %p160 = scmp.eq.s32.totalorder %s24, 0
      %p161 = por %p159, %p160
      %p162 = scmp.le.s32.totalorder 1, %s18
      %p163 = scmp.lt.s32.totalorder %s18, 3
      %p164 = pnand %p162, %p163
      %p165 = pneg %p164
      // Predicated region
      $region9: #{tpu_custom_call.1} parent=5 // pred_check
        _
      $region10: #{tpu_custom_call.1} parent=5 // pred_check_branch
        %167 = sbr.rel (%p164) target = $region12
      $region11: #{tpu_custom_call.1} parent=5 // pred_region
        %s168 = ssub.s32 %s18, 1
        // Predicated region
        $region13: #{tpu_custom_call.1} parent=11 // pred_check
          %p169 = pneg %p65
        $region14: #{tpu_custom_call.1} parent=11 // pred_check_branch
          %171 = sbr.rel (%p169) target = $region16
        $region15: #{tpu_custom_call.1} parent=11 // pred_region
          _
        $region16: #{tpu_custom_call.1} parent=11 // pred_fallthru
          _
        // Predicated region
        $region17: #{tpu_custom_call.1} parent=11 // pred_check
          %p172 = pneg %p86
        $region18: #{tpu_custom_call.1} parent=11 // pred_check_branch
          %174 = sbr.rel (%p172) target = $region20
        $region19: #{tpu_custom_call.1} parent=11 // pred_region
          %s176 = ssub.s32 16, 16
          %177 = vsyncadd [#allocation6], %s176
          %s179 = sshll.u32 [#allocation5], 4
          %s180 = int_to_ptr.vmem [resolvable:$true] %s179
          %182 = dma.hbm_to_vmem [thread:$0]  %s2, 16, %s180, [#allocation6]
        $region20: #{tpu_custom_call.1} parent=11 // pred_fallthru
          _
        // Predicated region
        $region21: #{tpu_custom_call.1} parent=11 // pred_check
          %p183 = pneg %p107
        $region22: #{tpu_custom_call.1} parent=11 // pred_check_branch
          %185 = sbr.rel (%p183) target = $region24
        $region23: #{tpu_custom_call.1} parent=11 // pred_region
          %s187 = ssub.s32 2048, 2048
          %188 = vsyncadd [#allocation6], %s187
          %s189 = sshll.u32 [#allocation7], 4
          %s190 = int_to_ptr.vmem [resolvable:$true] %s189
          %195 = dma.hbm_to_vmem [thread:$0]  %s3, 2048, %s190, [#allocation6], 128, 128, 8
        $region24: #{tpu_custom_call.1} parent=11 // pred_fallthru
          _
        // Predicated region
        $region25: #{tpu_custom_call.1} parent=11 // pred_check
          %p196 = pneg %p128
        $region26: #{tpu_custom_call.1} parent=11 // pred_check_branch
          %198 = sbr.rel (%p196) target = $region28
        $region27: #{tpu_custom_call.1} parent=11 // pred_region
          _
        $region28: #{tpu_custom_call.1} parent=11 // pred_fallthru
          _
      $region12: #{tpu_custom_call.1} parent=5 // pred_fallthru
        _
      %p199 = scmp.lt.s32.totalorder %s18, 2
      // Predicated region
      $region29: #{tpu_custom_call.1} parent=5 // pred_check
        %p200 = pneg %p199
      $region30: #{tpu_custom_call.1} parent=5 // pred_check_branch
        %202 = sbr.rel (%p200) target = $region32
      $region31: #{tpu_custom_call.1} parent=5 // pred_region
        // Predicated region
        $region33: #{tpu_custom_call.1} parent=31 // pred_check
          %p203 = pneg %p38
        $region34: #{tpu_custom_call.1} parent=31 // pred_check_branch
          %205 = sbr.rel (%p203) target = $region36
        $region35: #{tpu_custom_call.1} parent=31 // pred_region
          %s206 = sand.u32 %s28, 1
          %s207 = scalar_lea.sflag [#allocation3], %s206
          %s208 = sand.u32 %s28, 1
          %s209 = smul.addr %s208, 72
          %s210 = scalar_lea.vmem [#allocation2], %s209
          %s211 = smul.u32 9, %s18
          %s212 = ssub.s32 17, %s211
          %p213 = scmp.lt.s32.totalorder %s212, 9
          %s214 = scalar_select %p213, %s212, 9
          %s215 = smul.u32 128, %s214
          %s217 = ssub.s32 1152, %s215
          %218 = vsyncadd %s207, %s217
          %p219 = scmp.ne.s32.totalorder 0, %s215
          %s220 = smul.addr %s211, 128
          %s221 = scalar_lea.hbm %s0, %s220
          %s222 = smul.u32 8, %s214
          %s223 = sshll.u32 %s210, 4
          %s224 = int_to_ptr.vmem [resolvable:$true] %s223
          %s225 = sshll.u32 %s222, 4
          %229 = dma.hbm_to_vmem [thread:$0]  (%p219), %s221, %s225, %s224, %s207, 128, 128, 8
        $region36: #{tpu_custom_call.1} parent=31 // pred_fallthru
          _
      $region32: #{tpu_custom_call.1} parent=5 // pred_fallthru
        _
      %p230 = scmp.le.s32.totalorder 1, %s18
      %p231 = scmp.lt.s32.totalorder %s18, 3
      %p232 = pnand %p230, %p231
      %p233 = pneg %p232
      // Predicated region
      $region37: #{tpu_custom_call.1} parent=5 // pred_check
        _
      $region38: #{tpu_custom_call.1} parent=5 // pred_check_branch
        %235 = sbr.rel (%p232) target = $region40
      $region39: #{tpu_custom_call.1} parent=5 // pred_region
        %s236 = ssub.s32 %s18, 1
        %s237 = sand.u32 %s31, 1
        %s238 = scalar_lea.sflag [#allocation3], %s237
        %s239 = sand.u32 %s31, 1
        %s240 = smul.addr %s239, 72
        %s241 = scalar_lea.vmem [#allocation2], %s240
        // Predicated region
        $region41: #{tpu_custom_call.1} parent=39 // pred_check
          %p242 = pneg %p44
        $region42: #{tpu_custom_call.1} parent=39 // pred_check_branch
          %244 = sbr.rel (%p242) target = $region44
        $region43: #{tpu_custom_call.1} parent=39 // pred_region
          %245 = dma.done %s238, 1152
        $region44: #{tpu_custom_call.1} parent=39 // pred_fallthru
          _
        // Predicated region
        $region45: #{tpu_custom_call.1} parent=39 // pred_check
          %p246 = pneg %p86
        $region46: #{tpu_custom_call.1} parent=39 // pred_check_branch
          %248 = sbr.rel (%p246) target = $region48
        $region47: #{tpu_custom_call.1} parent=39 // pred_region
          %249 = dma.done [#allocation6], 16
        $region48: #{tpu_custom_call.1} parent=39 // pred_fallthru
          _
        // Predicated region
        $region49: #{tpu_custom_call.1} parent=39 // pred_check
          %p250 = pneg %p107
        $region50: #{tpu_custom_call.1} parent=39 // pred_check_branch
          %252 = sbr.rel (%p250) target = $region52
        $region51: #{tpu_custom_call.1} parent=39 // pred_region
          %253 = dma.done [#allocation6], 2048
        $region52: #{tpu_custom_call.1} parent=39 // pred_fallthru
          _
        %s254 = sand.u32 %s31, 1
        %s255 = scalar_lea.sflag [#allocation3], %s254
        %s256 = sand.u32 %s31, 1
        %s257 = smul.addr %s256, 72
        %s258 = scalar_lea.vmem [#allocation2], %s257
        %p259 = pneg %p44
        %p260 = pneg %p41
        %p261 = pneg %p65
        %p262 = pneg %p62
        %p263 = pneg %p86
        %p264 = pneg %p83
        %p265 = pneg %p107
        %p266 = pneg %p104
        %p267 = pneg %p128
        %p268 = pneg %p125
        %p269 = pneg %p154
        %p270 = pneg %p151
        %s271 = sand.u32 %s141, 1
        %s272 = scalar_lea.sflag [#allocation4], %s271
        %s273 = sand.u32 %s141, 1
        %s274 = smul.addr %s273, 144
        %s275 = scalar_lea.vmem [#allocation8], %s274
        %s276 = smul.u32 9, %s23
        %s277 = ssub.s32 17, %s276
        %p278 = scmp.lt.s32.totalorder %s277, 9
        %s279 = scalar_select %p278, %s277, 9
        %s280 = smul.u32 128, %s279
        %s281 = smul.u32 9, %s23
        %s282 = ssub.s32 17, %s281
        %p283 = scmp.lt.s32.totalorder %s282, 9
        %s284 = scalar_select %p283, %s282, 9
        %s285 = smul.u32 128, %s284
        %s286 = smul.u32 %s285, 2
        %v288 = vld [vmem:[%s241] sm:$0xff]
        %v289 = vld [vmem:[%s241 + $0x8] sm:$0xff]
        %v290 = vld [vmem:[%s241 + $0x10] sm:$0xff]
        %v291 = vld [vmem:[%s241 + $0x18] sm:$0xff]
        %v292 = vld [vmem:[%s241 + $0x20] sm:$0xff]
        %v293 = vld [vmem:[%s241 + $0x28] sm:$0xff]
        %v294 = vld [vmem:[%s241 + $0x30] sm:$0xff]
        %v295 = vld [vmem:[%s241 + $0x38] sm:$0xff]
        %v296 = vld [vmem:[%s241 + $0x40] sm:$0xff]
        %297 = vadd.xlane.f32.xlu0 %v288
        %v298 = vpop.xlane.xlu0 %297
        %299 = vadd.xlane.f32.xlu0 %v289
        %v300 = vpop.xlane.xlu0 %299
        %301 = vadd.xlane.f32.xlu0 %v290
        %v302 = vpop.xlane.xlu0 %301
        %303 = vadd.xlane.f32.xlu0 %v291
        %v304 = vpop.xlane.xlu0 %303
        %305 = vadd.xlane.f32.xlu0 %v292
        %v306 = vpop.xlane.xlu0 %305
        %307 = vadd.xlane.f32.xlu0 %v293
        %v308 = vpop.xlane.xlu0 %307
        %309 = vadd.xlane.f32.xlu0 %v294
        %v310 = vpop.xlane.xlu0 %309
        %311 = vadd.xlane.f32.xlu0 %v295
        %v312 = vpop.xlane.xlu0 %311
        %313 = vadd.xlane.f32.xlu0 %v296
        %v314 = vpop.xlane.xlu0 %313
        %v315 = vrcp.pop 128.0
        %v316 = vmul.f32 %v298, %v315
        %v317 = vmul.f32 %v300, %v315
        %v318 = vmul.f32 %v302, %v315
        %v319 = vmul.f32 %v304, %v315
        %v320 = vmul.f32 %v306, %v315
        %v321 = vmul.f32 %v308, %v315
        %v322 = vmul.f32 %v310, %v315
        %v323 = vmul.f32 %v312, %v315
        %v324 = vmul.f32 %v314, %v315
        %v325 = vsub.f32 %v288, %v316
        %v326 = vsub.f32 %v289, %v317
        %v327 = vsub.f32 %v290, %v318
        %v328 = vsub.f32 %v291, %v319
        %v329 = vsub.f32 %v292, %v320
        %v330 = vsub.f32 %v293, %v321
        %v331 = vsub.f32 %v294, %v322
        %v332 = vsub.f32 %v295, %v323
        %v333 = vsub.f32 %v296, %v324
        %v334 = vmul.f32 %v325, %v325
        %v335 = vmul.f32 %v326, %v326
        %v336 = vmul.f32 %v327, %v327
        %v337 = vmul.f32 %v328, %v328
        %v338 = vmul.f32 %v329, %v329
        %v339 = vmul.f32 %v330, %v330
        %v340 = vmul.f32 %v331, %v331
        %v341 = vmul.f32 %v332, %v332
        %v342 = vmul.f32 %v333, %v333
        %343 = vadd.xlane.f32.xlu0 %v334
        %v344 = vpop.xlane.xlu0 %343
        %345 = vadd.xlane.f32.xlu0 %v335
        %v346 = vpop.xlane.xlu0 %345
        %347 = vadd.xlane.f32.xlu0 %v336
        %v348 = vpop.xlane.xlu0 %347
        %349 = vadd.xlane.f32.xlu0 %v337
        %v350 = vpop.xlane.xlu0 %349
        %351 = vadd.xlane.f32.xlu0 %v338
        %v352 = vpop.xlane.xlu0 %351
        %353 = vadd.xlane.f32.xlu0 %v339
        %v354 = vpop.xlane.xlu0 %353
        %355 = vadd.xlane.f32.xlu0 %v340
        %v356 = vpop.xlane.xlu0 %355
        %357 = vadd.xlane.f32.xlu0 %v341
        %v358 = vpop.xlane.xlu0 %357
        %359 = vadd.xlane.f32.xlu0 %v342
        %v360 = vpop.xlane.xlu0 %359
        %v361 = vmul.f32 %v344, %v315
        %v362 = vmul.f32 %v346, %v315
        %v363 = vmul.f32 %v348, %v315
        %v364 = vmul.f32 %v350, %v315
        %v365 = vmul.f32 %v352, %v315
        %v366 = vmul.f32 %v354, %v315
        %v367 = vmul.f32 %v356, %v315
        %v368 = vmul.f32 %v358, %v315
        %v369 = vmul.f32 %v360, %v315
        %v370 = vadd.f32 %v361, 1e-05
        %v371 = vadd.f32 %v362, 1e-05
        %v372 = vadd.f32 %v363, 1e-05
        %v373 = vadd.f32 %v364, 1e-05
        %v374 = vadd.f32 %v365, 1e-05
        %v375 = vadd.f32 %v366, 1e-05
        %v376 = vadd.f32 %v367, 1e-05
        %v377 = vadd.f32 %v368, 1e-05
        %v378 = vadd.f32 %v369, 1e-05
        %v379 = vrsqrt.pop %v370
        %v380 = vrsqrt.pop %v371
        %v381 = vrsqrt.pop %v372
        %v382 = vrsqrt.pop %v373
        %v383 = vrsqrt.pop %v374
        %v384 = vrsqrt.pop %v375
        %v385 = vrsqrt.pop %v376
        %v386 = vrsqrt.pop %v377
        %v387 = vrsqrt.pop %v378
        %v388 = vmul.f32 %v325, %v379
        %v389 = vmul.f32 %v326, %v380
        %v390 = vmul.f32 %v327, %v381
        %v391 = vmul.f32 %v328, %v382
        %v392 = vmul.f32 %v329, %v383
        %v393 = vmul.f32 %v330, %v384
        %v394 = vmul.f32 %v331, %v385
        %v395 = vmul.f32 %v332, %v386
        %v396 = vmul.f32 %v333, %v387
        %v397 = vld [vmem:[%s1] sm:$0x1]
        %v399 = vlaneseq
        %v400 = vshrl.u32 %v399, 7
        %v401 = vsub.s32 0, %v400
        %v402 = vrot.slane %v397, %v401
        %v404 = vmul.f32 %v388, %v402
        %v405 = vmul.f32 %v389, %v402
        %v406 = vmul.f32 %v390, %v402
        %v407 = vmul.f32 %v391, %v402
        %v408 = vmul.f32 %v392, %v402
        %v409 = vmul.f32 %v393, %v402
        %v410 = vmul.f32 %v394, %v402
        %v411 = vmul.f32 %v395, %v402
        %v412 = vmul.f32 %v396, %v402
        %v413 = vld [vmem:[#allocation5] sm:$0x1]
        %v415 = vlaneseq
        %v416 = vshrl.u32 %v415, 7
        %v417 = vsub.s32 0, %v416
        %v418 = vrot.slane %v413, %v417
        %v420 = vadd.f32 %v404, %v418
        %v421 = vadd.f32 %v405, %v418
        %v422 = vadd.f32 %v406, %v418
        %v423 = vadd.f32 %v407, %v418
        %v424 = vadd.f32 %v408, %v418
        %v425 = vadd.f32 %v409, %v418
        %v426 = vadd.f32 %v410, %v418
        %v427 = vadd.f32 %v411, %v418
        %v428 = vadd.f32 %v412, %v418
        %v429 = vpack.c.bf16 %v421, %v420
        %v430 = vpack.c.bf16 %v423, %v422
        %v431 = vpack.c.bf16 %v425, %v424
        %v432 = vpack.c.bf16 %v427, %v426
        %v433 = vpack.c.bf16 %v428, %v428
        %v434 = vld [vmem:[#allocation7] sm:$0xff]
        %v435 = vld [vmem:[#allocation7 + $0x8] sm:$0xff]
        %v436 = vld [vmem:[#allocation7 + $0x10] sm:$0xff]
        %v437 = vld [vmem:[#allocation7 + $0x18] sm:$0xff]
        %v438 = vld [vmem:[#allocation7 + $0x20] sm:$0xff]
        %v439 = vld [vmem:[#allocation7 + $0x28] sm:$0xff]
        %v440 = vld [vmem:[#allocation7 + $0x30] sm:$0xff]
        %v441 = vld [vmem:[#allocation7 + $0x38] sm:$0xff]
        %v442 = vld [vmem:[#allocation7 + $0x40] sm:$0xff]
        %v443 = vld [vmem:[#allocation7 + $0x48] sm:$0xff]
        %v444 = vld [vmem:[#allocation7 + $0x50] sm:$0xff]
        %v445 = vld [vmem:[#allocation7 + $0x58] sm:$0xff]
        %v446 = vld [vmem:[#allocation7 + $0x60] sm:$0xff]
        %v447 = vld [vmem:[#allocation7 + $0x68] sm:$0xff]
        %v448 = vld [vmem:[#allocation7 + $0x70] sm:$0xff]
        %v449 = vld [vmem:[#allocation7 + $0x78] sm:$0xff]
        %v450 = vld [vmem:[%s4] sm:$0x3]
        %v452 = vlaneseq
        %v453 = vshrl.u32 %v452, 7
        %v454 = vsub.s32 0, %v453
        %v455 = vrot.slane %v450, %v454
        %v456 = vlaneseq
        %v457 = vshrl.u32 %v456, 7
        %v458 = vsub.s32 1, %v457
        %v459 = vrot.slane %v450, %v458
        %v478 = vunpack.c.l.b16 %v434
        %v479 = vunpack.c.h.b16 %v434
        %v480 = vunpack.c.l.b16 %v435
        %v481 = vunpack.c.h.b16 %v435
        %v482 = vunpack.c.l.b16 %v436
        %v483 = vunpack.c.h.b16 %v436
        %v484 = vunpack.c.l.b16 %v437
        %v485 = vunpack.c.h.b16 %v437
        %v486 = vunpack.c.l.b16 %v438
        %v487 = vunpack.c.h.b16 %v438
        %v488 = vunpack.c.l.b16 %v439
        %v489 = vunpack.c.h.b16 %v439
        %v490 = vunpack.c.l.b16 %v440
        %v491 = vunpack.c.h.b16 %v440
        %v492 = vunpack.c.l.b16 %v441
        %v493 = vunpack.c.h.b16 %v441
        %v494 = vunpack.c.l.b16 %v442
        %v495 = vunpack.c.h.b16 %v442
        %v496 = vunpack.c.l.b16 %v443
        %v497 = vunpack.c.h.b16 %v443
        %v498 = vunpack.c.l.b16 %v444
        %v499 = vunpack.c.h.b16 %v444
        %v500 = vunpack.c.l.b16 %v445
        %v501 = vunpack.c.h.b16 %v445
        %v502 = vunpack.c.l.b16 %v446
        %v503 = vunpack.c.h.b16 %v446
        %v504 = vunpack.c.l.b16 %v447
        %v505 = vunpack.c.h.b16 %v447
        %v506 = vunpack.c.l.b16 %v448
        %v507 = vunpack.c.h.b16 %v448
        %v508 = vunpack.c.l.b16 %v449
        %v509 = vunpack.c.h.b16 %v449
        %v510 = vpack.c.b16 %v480, %v478
        %v511 = vpack.c.b16 %v481, %v479
        %v512 = vpack.c.b16 %v484, %v482
        %v513 = vpack.c.b16 %v485, %v483
        %v514 = vpack.c.b16 %v488, %v486
        %v515 = vpack.c.b16 %v489, %v487
        %v516 = vpack.c.b16 %v492, %v490
        %v517 = vpack.c.b16 %v493, %v491
        %v518 = vpack.c.b16 %v496, %v494
        %v519 = vpack.c.b16 %v497, %v495
        %v520 = vpack.c.b16 %v500, %v498
        %v521 = vpack.c.b16 %v501, %v499
        %v522 = vpack.c.b16 %v504, %v502
        %v523 = vpack.c.b16 %v505, %v503
        %v524 = vpack.c.b16 %v508, %v506
        %v525 = vpack.c.b16 %v509, %v507
        %542 = vmatprep.subr.bf16.mxu0 %v525
        %543 = vmatpush1.bf16.msra.mxu0 %v524
        %544 = vmatprep.subr.bf16.mxu0 %v523
        %545 = vmatpush1.bf16.msra.mxu0 %v522
        %546 = vmatprep.subr.bf16.mxu0 %v521
        %547 = vmatpush1.bf16.msra.mxu0 %v520
        %548 = vmatprep.subr.bf16.mxu0 %v519
        %549 = vmatpush1.bf16.msra.mxu0 %v518
        %550 = vmatprep.subr.bf16.mxu0 %v517
        %551 = vmatpush1.bf16.msra.mxu0 %v516
        %552 = vmatprep.subr.bf16.mxu0 %v515
        %553 = vmatpush1.bf16.msra.mxu0 %v514
        %554 = vmatprep.subr.bf16.mxu0 %v513
        %555 = vmatpush1.bf16.msra.mxu0 %v512
        %556 = vmatprep.subr.bf16.mxu0 %v511
        %557 = vmatpush1.bf16.msra.mxu0 %v510
        %558 = vmatprep.subr.bf16.mxu0 0
        %559 = vmatpush2.bf16.msra.mxu0 0
        %560 = vmatprep.subr.bf16.mxu0 0
        %561 = vmatpush2.bf16.msra.mxu0 0
        %562 = vmatprep.subr.bf16.mxu0 0
        %563 = vmatpush2.bf16.msra.mxu0 0
        %564 = vmatprep.subr.bf16.mxu0 0
        %565 = vmatpush2.bf16.msra.mxu0 0
        %566 = vmatprep.subr.bf16.mxu0 0
        %567 = vmatpush2.bf16.msra.mxu0 0
        %568 = vmatprep.subr.bf16.mxu0 0
        %569 = vmatpush2.bf16.msra.mxu0 0
        %570 = vmatprep.subr.bf16.mxu0 0
        %571 = vmatpush2.bf16.msra.mxu0 0
        %572 = vmatprep.subr.bf16.mxu0 0
        %573 = vmatpush2.bf16.msra.mxu0 0
        %574 = vmatprep.mubr.bf16.mxu0 0
        %575 = vmatmul.mubr.bf16.gmra.mxu0 %v429
        %v576 = vpop.f32.mrf.mxu0
        %v577 = vadd.f32 %v455, %v576
        %v578 = vpop.f32.mrf.mxu0
        %v579 = vadd.f32 %v459, %v578
        %v580 = vpop.f32.mrf.mxu0
        %v581 = vadd.f32 %v455, %v580
        %v582 = vpop.f32.mrf.mxu0
        %v583 = vadd.f32 %v459, %v582
        %584 = vmatprep.mubr.bf16.mxu0 0
        %585 = vmatmul.mubr.bf16.gmra.mxu0 %v430
        %v586 = vpop.f32.mrf.mxu0
        %v587 = vadd.f32 %v455, %v586
        %v588 = vpop.f32.mrf.mxu0
        %v589 = vadd.f32 %v459, %v588
        %v590 = vpop.f32.mrf.mxu0
        %v591 = vadd.f32 %v455, %v590
        %v592 = vpop.f32.mrf.mxu0
        %v593 = vadd.f32 %v459, %v592
        %594 = vmatprep.mubr.bf16.mxu0 0
        %595 = vmatmul.mubr.bf16.gmra.mxu0 %v431
        %v596 = vpop.f32.mrf.mxu0
        %v597 = vadd.f32 %v455, %v596
        %v598 = vpop.f32.mrf.mxu0
        %v599 = vadd.f32 %v459, %v598
        %v600 = vpop.f32.mrf.mxu0
        %v601 = vadd.f32 %v455, %v600
        %v602 = vpop.f32.mrf.mxu0
        %v603 = vadd.f32 %v459, %v602
        %604 = vmatprep.mubr.bf16.mxu0 0
        %605 = vmatmul.mubr.bf16.gmra.mxu0 %v432
        %v606 = vpop.f32.mrf.mxu0
        %v607 = vadd.f32 %v455, %v606
        %v608 = vpop.f32.mrf.mxu0
        %v609 = vadd.f32 %v459, %v608
        %v610 = vpop.f32.mrf.mxu0
        %v611 = vadd.f32 %v455, %v610
        %v612 = vpop.f32.mrf.mxu0
        %v613 = vadd.f32 %v459, %v612
        %614 = vmatprep.mubr.bf16.mxu0 0
        %615 = vmatmul.mubr.bf16.gmra.mxu0 %v433
        %v616 = vpop.f32.mrf.mxu0
        %v617 = vadd.f32 %v455, %v616
        %v618 = vpop.f32.mrf.mxu0
        %v619 = vadd.f32 %v459, %v618
        %v620 = vpop.f32.mrf.mxu0
        %v621 = vpop.f32.mrf.mxu0
        %622 = vdwg.mxu0
        %623 = vst [vmem:[%s275] sm:$0xff] %v577
        %624 = vst [vmem:[%s275 + $0x8] sm:$0xff] %v579
        %625 = vst [vmem:[%s275 + $0x10] sm:$0xff] %v581
        %626 = vst [vmem:[%s275 + $0x18] sm:$0xff] %v583
        %627 = vst [vmem:[%s275 + $0x20] sm:$0xff] %v587
        %628 = vst [vmem:[%s275 + $0x28] sm:$0xff] %v589
        %629 = vst [vmem:[%s275 + $0x30] sm:$0xff] %v591
        %630 = vst [vmem:[%s275 + $0x38] sm:$0xff] %v593
        %631 = vst [vmem:[%s275 + $0x40] sm:$0xff] %v597
        %632 = vst [vmem:[%s275 + $0x48] sm:$0xff] %v599
        %633 = vst [vmem:[%s275 + $0x50] sm:$0xff] %v601
        %634 = vst [vmem:[%s275 + $0x58] sm:$0xff] %v603
        %635 = vst [vmem:[%s275 + $0x60] sm:$0xff] %v607
        %636 = vst [vmem:[%s275 + $0x68] sm:$0xff] %v609
        %637 = vst [vmem:[%s275 + $0x70] sm:$0xff] %v611
        %638 = vst [vmem:[%s275 + $0x78] sm:$0xff] %v613
        %639 = vst [vmem:[%s275 + $0x80] sm:$0xff] %v617
        %640 = vst [vmem:[%s275 + $0x88] sm:$0xff] %v619
        %s641 = sand.u32 %s141, 1
        %s642 = scalar_lea.sflag [#allocation4], %s641
        %s643 = sand.u32 %s141, 1
        %s644 = smul.addr %s643, 144
        %s645 = scalar_lea.vmem [#allocation8], %s644
        // Predicated region
        $region53: #{tpu_custom_call.1} parent=39 // pred_check
          %p646 = pneg %p151
        $region54: #{tpu_custom_call.1} parent=39 // pred_check_branch
          %648 = sbr.rel (%p646) target = $region56
        $region55: #{tpu_custom_call.1} parent=39 // pred_region
          %s649 = smul.u32 9, %s23
          %s650 = ssub.s32 17, %s649
          %p651 = scmp.lt.s32.totalorder %s650, 9
          %s652 = scalar_select %p651, %s650, 9
          %s653 = smul.u32 128, %s652
          %s654 = smul.u32 %s653, 2
          %s656 = ssub.s32 2304, %s654
          %657 = vsyncadd %s642, %s656
          %p658 = scmp.ne.s32.totalorder 0, %s654
          %s659 = smul.addr %s649, 2
          %s660 = smul.addr %s659, 128
          %s661 = scalar_lea.hbm %s5, %s660
          %s662 = smul.u32 16, %s652
          %s663 = sshll.u32 %s645, 4
          %s664 = int_to_ptr.vmem [resolvable:$true] %s663
          %s665 = sshll.u32 %s662, 4
          %669 = dma.vmem_to_hbm [thread:$0]  (%p658), %s664, %s665, %s661, %s642, 256, 256, 16
        $region56: #{tpu_custom_call.1} parent=39 // pred_fallthru
          _
      $region40: #{tpu_custom_call.1} parent=5 // pred_fallthru
        _
      %p670 = scmp.le.s32.totalorder 2, %s18
      // Predicated region
      $region57: #{tpu_custom_call.1} parent=5 // pred_check
        %p671 = pneg %p670
      $region58: #{tpu_custom_call.1} parent=5 // pred_check_branch
        %673 = sbr.rel (%p671) target = $region60
      $region59: #{tpu_custom_call.1} parent=5 // pred_region
        %s674 = ssub.s32 %s18, 2
        // Predicated region
        $region61: #{tpu_custom_call.1} parent=59 // pred_check
          %p675 = pneg %p157
        $region62: #{tpu_custom_call.1} parent=59 // pred_check_branch
          %677 = sbr.rel (%p675) target = $region64
        $region63: #{tpu_custom_call.1} parent=59 // pred_region
          %s678 = sand.u32 %s142, 1
          %s679 = scalar_lea.sflag [#allocation4], %s678
          %s680 = sand.u32 %s142, 1
          %s681 = smul.addr %s680, 144
          %s682 = scalar_lea.vmem [#allocation8], %s681
          %683 = dma.done %s679, 2304
        $region64: #{tpu_custom_call.1} parent=59 // pred_fallthru
          _
      $region60: #{tpu_custom_call.1} parent=5 // pred_fallthru
        _
    $region6: #{tpu_custom_call.1} parent=1 // loop_footer
      %s22 = sadd.s32 1, %s18
    $region7: #{tpu_custom_call.1} parent=1 // loop_footer_branch
      %17 = sbr.rel target = $region3
    $region8: #{tpu_custom_call.1} parent=1 // loop_exit
      _
    %684 = vsyncpa [#allocation3], 1
    %s685 = scalar_lea.sflag [#allocation3], 1
    %686 = vsyncpa %s685, 1
    %687 = vsyncpa [#allocation6], 1
    %688 = vsyncpa [#allocation4], 1
    %s689 = scalar_lea.sflag [#allocation4], 1
    %690 = vsyncpa %s689, 1

// kernel: tpu_custom_call.1
$region0: #{tpu_custom_call.1}
  #allocation0 [shape = 'u32[]', space=smem, size = 0x4, offset = 0x4, fixed_abs, tag = 'smem constant byte address 0x4 - core index']
  #allocation1 [shape = 'u32[144,128]{1,0:T(1,128)}', space=vmem, size = 0x12000, scoped, tag = 'internal scratch']
  %s0 = inlined_call_operand.hbm [shape: f32[130,128], index: 0, kind: input, shape index: {}]
  %s1 = inlined_call_operand.vmem [shape: f32[1,128], index: 1, kind: input, shape index: {}]
  %s2 = inlined_call_operand.hbm [shape: f32[1,128], index: 2, kind: input, shape index: {}]
  %s3 = inlined_call_operand.hbm [shape: bf16[128,256], index: 3, kind: input, shape index: {}]
  %s4 = inlined_call_operand.vmem [shape: f32[1,256], index: 4, kind: input, shape index: {}]
  %s5 = inlined_call_operand.hbm [shape: f32[130,256], index: 5, kind: output, shape index: {}]
  %s6 = sld [smem:[#allocation0]]
  $region65: #{tpu_custom_call.1} parent=0
    _
  %s8 = ssub.s32 1, %s6
  %s9 = scalar_select 0, %s8, %s6
  $region1: #{tpu_custom_call.1} parent=0
    #allocation2 [shape = 'u8[73728]{0}', space=vmem, size = 0x12000, scoped, tag = 'input window, operand 0']
    #allocation3 [shape = 's32[2]{0}', space=sflag, size = 0x8, scoped, tag = 'scoped memory for tpu_custom_call.1']
    #allocation4 [shape = 's32[2]{0}', space=sflag, size = 0x8, scoped, tag = 'scoped memory for tpu_custom_call.1']
    #allocation5 [shape = 'u8[512]{0}', space=vmem, size = 0x400, scoped, tag = 'input window, operand 2, single buffered']
    #allocation6 [shape = 's32[1]{0}', space=sflag, size = 0x4, scoped, tag = 'scoped memory for tpu_custom_call.1']
    #allocation7 [shape = 'u8[65536]{0}', space=vmem, size = 0x10000, scoped, tag = 'input window, operand 3, single buffered']
    #allocation8 [shape = 'u8[147456]{0}', space=vmem, size = 0x24000, scoped, tag = 'output window, operand 0']
    %10 = vsyncpa [#allocation3], 0
    %s11 = scalar_lea.sflag [#allocation3], 1
    %12 = vsyncpa %s11, 0
    %13 = vsyncpa [#allocation6], 0
    %14 = vsyncpa [#allocation4], 0
    %s15 = scalar_lea.sflag [#allocation4], 1
    %16 = vsyncpa %s15, 0
    loop: start=0, step=1, limit=4
    $region2: #{tpu_custom_call.1} parent=1 // loop_pre_header
      _
    $region3: #{tpu_custom_call.1} parent=1 // loop_header
      %s18 = sphi 0, %s22
      %p19 = scmp.ge.s32.totalorder %s18, 4
      %s28 = sphi 0, %s30
      %s31 = sphi 0, %s28
      %s32 = sphi 0, %s31
      %s48 = sphi 0, %s32
      %s52 = sphi 0, %s52
      %s54 = sphi 0, %s52
      %s55 = sphi 0, %s54
      %s69 = sphi 0, %s55
      %s73 = sphi 0, %s73
      %s75 = sphi 0, %s73
      %s76 = sphi 0, %s75
      %s90 = sphi 0, %s76
      %s94 = sphi 0, %s94
      %s96 = sphi 0, %s94
      %s97 = sphi 0, %s96
      %s111 = sphi 0, %s97
      %s115 = sphi 0, %s115
      %s117 = sphi 0, %s115
      %s118 = sphi 0, %s117
      %s132 = sphi 0, %s118
      %s138 = sphi 0, %s140
      %s141 = sphi 0, %s138
      %s142 = sphi 0, %s141
      %s158 = sphi 0, %s142
    $region4: #{tpu_custom_call.1} parent=1 // loop_header_branch
      %21 = sbr.rel (%p19) target = $region8
    $region5: #{tpu_custom_call.1} parent=1 // loop_body
      %s23 = ssub.s32 %s18, 1
      %s24 = ssub.s32 %s18, 2
      %s25 = sadd.s32 %s18, 1
      %s26 = ssub.s32 %s18, %s25
      %p27 = scmp.eq.s32.totalorder %s26, 0
      %s29 = sadd.s32 %s28, 1
      %s30 = scalar_select %p27, %s28, %s29
      %p33 = pneg %p27
      %p34 = scmp.eq.s32.totalorder %s18, 1
      %p35 = por %p33, %p34
      %p36 = scmp.ne.s32.totalorder %s28, %s31
      %p37 = scmp.eq.s32.totalorder %s18, 0
      %p38 = por %p36, %p37
      %p39 = scmp.ne.s32.totalorder %s28, %s31
      %p40 = scmp.eq.s32.totalorder %s23, 1
      %p41 = por %p39, %p40
      %p42 = scmp.ne.s32.totalorder %s31, %s32
      %p43 = scmp.eq.s32.totalorder %s23, 0
      %p44 = por %p42, %p43
      %p45 = scmp.ne.s32.totalorder %s31, %s32
      %p46 = scmp.eq.s32.totalorder %s24, 1
      %p47 = por %p45, %p46
      %p49 = scmp.ne.s32.totalorder %s32, %s48
      %p50 = scmp.eq.s32.totalorder %s24, 0
      %p51 = por %p49, %p50
      %s53 = sadd.s32 %s52, 1
      %p56 = scmp.eq.s32.totalorder %s18, 1
      %p57 = scmp.ne.s32.totalorder %s52, %s54
      %p58 = scmp.eq.s32.totalorder %s18, 0
      %p59 = por %p57, %p58
      %p60 = scmp.ne.s32.totalorder %s52, %s54
      %p61 = scmp.eq.s32.totalorder %s23, 1
      %p62 = por %p60, %p61
      %p63 = scmp.ne.s32.totalorder %s54, %s55
      %p64 = scmp.eq.s32.totalorder %s23, 0
      %p65 = por %p63, %p64
      %p66 = scmp.ne.s32.totalorder %s54, %s55
      %p67 = scmp.eq.s32.totalorder %s24, 1
      %p68 = por %p66, %p67
      %p70 = scmp.ne.s32.totalorder %s55, %s69
      %p71 = scmp.eq.s32.totalorder %s24, 0
      %p72 = por %p70, %p71
      %s74 = sadd.s32 %s73, 1
      %p77 = scmp.eq.s32.totalorder %s18, 1
      %p78 = scmp.ne.s32.totalorder %s73, %s75
      %p79 = scmp.eq.s32.totalorder %s18, 0
      %p80 = por %p78, %p79
      %p81 = scmp.ne.s32.totalorder %s73, %s75
      %p82 = scmp.eq.s32.totalorder %s23, 1
      %p83 = por %p81, %p82
      %p84 = scmp.ne.s32.totalorder %s75, %s76
      %p85 = scmp.eq.s32.totalorder %s23, 0
      %p86 = por %p84, %p85
      %p87 = scmp.ne.s32.totalorder %s75, %s76
      %p88 = scmp.eq.s32.totalorder %s24, 1
      %p89 = por %p87, %p88
      %p91 = scmp.ne.s32.totalorder %s76, %s90
      %p92 = scmp.eq.s32.totalorder %s24, 0
      %p93 = por %p91, %p92
      %s95 = sadd.s32 %s94, 1
      %p98 = scmp.eq.s32.totalorder %s18, 1
      %p99 = scmp.ne.s32.totalorder %s94, %s96
      %p100 = scmp.eq.s32.totalorder %s18, 0
      %p101 = por %p99, %p100
      %p102 = scmp.ne.s32.totalorder %s94, %s96
      %p103 = scmp.eq.s32.totalorder %s23, 1
      %p104 = por %p102, %p103
      %p105 = scmp.ne.s32.totalorder %s96, %s97
      %p106 = scmp.eq.s32.totalorder %s23, 0
      %p107 = por %p105, %p106
      %p108 = scmp.ne.s32.totalorder %s96, %s97
      %p109 = scmp.eq.s32.totalorder %s24, 1
      %p110 = por %p108, %p109
      %p112 = scmp.ne.s32.totalorder %s97, %s111
      %p113 = scmp.eq.s32.totalorder %s24, 0
      %p114 = por %p112, %p113
      %s116 = sadd.s32 %s115, 1
      %p119 = scmp.eq.s32.totalorder %s18, 1
      %p120 = scmp.ne.s32.totalorder %s115, %s117
      %p121 = scmp.eq.s32.totalorder %s18, 0
      %p122 = por %p120, %p121
      %p123 = scmp.ne.s32.totalorder %s115, %s117
      %p124 = scmp.eq.s32.totalorder %s23, 1
      %p125 = por %p123, %p124
      %p126 = scmp.ne.s32.totalorder %s117, %s118
      %p127 = scmp.eq.s32.totalorder %s23, 0
      %p128 = por %p126, %p127
      %p129 = scmp.ne.s32.totalorder %s117, %s118
      %p130 = scmp.eq.s32.totalorder %s24, 1
      %p131 = por %p129, %p130
      %p133 = scmp.ne.s32.totalorder %s118, %s132
      %p134 = scmp.eq.s32.totalorder %s24, 0
      %p135 = por %p133, %p134
      %s136 = ssub.s32 %s18, %s25
      %p137 = scmp.eq.s32.totalorder %s136, 0
      %s139 = sadd.s32 %s138, 1
      %s140 = scalar_select %p137, %s138, %s139
      %p143 = pneg %p137
      %p144 = scmp.eq.s32.totalorder %s18, 1
      %p145 = por %p143, %p144
      %p146 = scmp.ne.s32.totalorder %s138, %s141
      %p147 = scmp.eq.s32.totalorder %s18, 0
      %p148 = por %p146, %p147
      %p149 = scmp.ne.s32.totalorder %s138, %s141
      %p150 = scmp.eq.s32.totalorder %s23, 1
      %p151 = por %p149, %p150
      %p152 = scmp.ne.s32.totalorder %s141, %s142
      %p153 = scmp.eq.s32.totalorder %s23, 0
      %p154 = por %p152, %p153
      %p155 = scmp.ne.s32.totalorder %s141, %s142
      %p156 = scmp.eq.s32.totalorder %s24, 1
      %p157 = por %p155, %p156
      %p159 = scmp.ne.s32.totalorder %s142, %s158
      %p160 = scmp.eq.s32.totalorder %s24, 0
      %p161 = por %p159, %p160
      %p162 = scmp.le.s32.totalorder 1, %s18
      %p163 = scmp.lt.s32.totalorder %s18, 3
      %p164 = pnand %p162, %p163
      %p165 = pneg %p164
      // Predicated region
      $region9: #{tpu_custom_call.1} parent=5 // pred_check
        _
      $region10: #{tpu_custom_call.1} parent=5 // pred_check_branch
        %167 = sbr.rel (%p164) target = $region12
      $region11: #{tpu_custom_call.1} parent=5 // pred_region
        %s168 = ssub.s32 %s18, 1
        // Predicated region
        $region13: #{tpu_custom_call.1} parent=11 // pred_check
          %p169 = pneg %p65
        $region14: #{tpu_custom_call.1} parent=11 // pred_check_branch
          %171 = sbr.rel (%p169) target = $region16
        $region15: #{tpu_custom_call.1} parent=11 // pred_region
          _
        $region16: #{tpu_custom_call.1} parent=11 // pred_fallthru
          _
        // Predicated region
        $region17: #{tpu_custom_call.1} parent=11 // pred_check
          %p172 = pneg %p86
        $region18: #{tpu_custom_call.1} parent=11 // pred_check_branch
          %174 = sbr.rel (%p172) target = $region20
        $region19: #{tpu_custom_call.1} parent=11 // pred_region
          %s176 = ssub.s32 16, 16
          %177 = vsyncadd [#allocation6], %s176
          %s179 = sshll.u32 [#allocation5], 4
          %s180 = int_to_ptr.vmem [resolvable:$true] %s179
          %182 = dma.hbm_to_vmem [thread:$0]  %s2, 16, %s180, [#allocation6]
        $region20: #{tpu_custom_call.1} parent=11 // pred_fallthru
          _
        // Predicated region
        $region21: #{tpu_custom_call.1} parent=11 // pred_check
          %p183 = pneg %p107
        $region22: #{tpu_custom_call.1} parent=11 // pred_check_branch
          %185 = sbr.rel (%p183) target = $region24
        $region23: #{tpu_custom_call.1} parent=11 // pred_region
          %s187 = ssub.s32 2048, 2048
          %188 = vsyncadd [#allocation6], %s187
          %s189 = sshll.u32 [#allocation7], 4
          %s190 = int_to_ptr.vmem [resolvable:$true] %s189
          %195 = dma.hbm_to_vmem [thread:$0]  %s3, 2048, %s190, [#allocation6], 128, 128, 8
        $region24: #{tpu_custom_call.1} parent=11 // pred_fallthru
          _
        // Predicated region
        $region25: #{tpu_custom_call.1} parent=11 // pred_check
          %p196 = pneg %p128
        $region26: #{tpu_custom_call.1} parent=11 // pred_check_branch
          %198 = sbr.rel (%p196) target = $region28
        $region27: #{tpu_custom_call.1} parent=11 // pred_region
          _
        $region28: #{tpu_custom_call.1} parent=11 // pred_fallthru
          _
      $region12: #{tpu_custom_call.1} parent=5 // pred_fallthru
        _
      %p199 = scmp.lt.s32.totalorder %s18, 2
      // Predicated region
      $region29: #{tpu_custom_call.1} parent=5 // pred_check
        %p200 = pneg %p199
      $region30: #{tpu_custom_call.1} parent=5 // pred_check_branch
        %202 = sbr.rel (%p200) target = $region32
      $region31: #{tpu_custom_call.1} parent=5 // pred_region
        // Predicated region
        $region33: #{tpu_custom_call.1} parent=31 // pred_check
          %p203 = pneg %p38
        $region34: #{tpu_custom_call.1} parent=31 // pred_check_branch
          %205 = sbr.rel (%p203) target = $region36
        $region35: #{tpu_custom_call.1} parent=31 // pred_region
          %s206 = sand.u32 %s28, 1
          %s207 = scalar_lea.sflag [#allocation3], %s206
          %s208 = sand.u32 %s28, 1
          %s209 = smul.addr %s208, 72
          %s210 = scalar_lea.vmem [#allocation2], %s209
          %s211 = smul.u32 9, %s18
          %s212 = ssub.s32 17, %s211
          %p213 = scmp.lt.s32.totalorder %s212, 9
          %s214 = scalar_select %p213, %s212, 9
          %s215 = smul.u32 128, %s214
          %s217 = ssub.s32 1152, %s215
          %218 = vsyncadd %s207, %s217
          %p219 = scmp.ne.s32.totalorder 0, %s215
          %s220 = smul.addr %s211, 128
          %s221 = scalar_lea.hbm %s0, %s220
          %s222 = smul.u32 8, %s214
          %s223 = sshll.u32 %s210, 4
          %s224 = int_to_ptr.vmem [resolvable:$true] %s223
          %s225 = sshll.u32 %s222, 4
          %229 = dma.hbm_to_vmem [thread:$0]  (%p219), %s221, %s225, %s224, %s207, 128, 128, 8
        $region36: #{tpu_custom_call.1} parent=31 // pred_fallthru
          _
      $region32: #{tpu_custom_call.1} parent=5 // pred_fallthru
        _
      %p230 = scmp.le.s32.totalorder 1, %s18
      %p231 = scmp.lt.s32.totalorder %s18, 3
      %p232 = pnand %p230, %p231
      %p233 = pneg %p232
      // Predicated region
      $region37: #{tpu_custom_call.1} parent=5 // pred_check
        _
      $region38: #{tpu_custom_call.1} parent=5 // pred_check_branch
        %235 = sbr.rel (%p232) target = $region40
      $region39: #{tpu_custom_call.1} parent=5 // pred_region
        %s236 = ssub.s32 %s18, 1
        %s237 = sand.u32 %s31, 1
        %s238 = scalar_lea.sflag [#allocation3], %s237
        %s239 = sand.u32 %s31, 1
        %s240 = smul.addr %s239, 72
        %s241 = scalar_lea.vmem [#allocation2], %s240
        // Predicated region
        $region41: #{tpu_custom_call.1} parent=39 // pred_check
          %p242 = pneg %p44
        $region42: #{tpu_custom_call.1} parent=39 // pred_check_branch
          %244 = sbr.rel (%p242) target = $region44
        $region43: #{tpu_custom_call.1} parent=39 // pred_region
          %245 = dma.done %s238, 1152
        $region44: #{tpu_custom_call.1} parent=39 // pred_fallthru
          _
        // Predicated region
        $region45: #{tpu_custom_call.1} parent=39 // pred_check
          %p246 = pneg %p86
        $region46: #{tpu_custom_call.1} parent=39 // pred_check_branch
          %248 = sbr.rel (%p246) target = $region48
        $region47: #{tpu_custom_call.1} parent=39 // pred_region
          %249 = dma.done [#allocation6], 16
        $region48: #{tpu_custom_call.1} parent=39 // pred_fallthru
          _
        // Predicated region
        $region49: #{tpu_custom_call.1} parent=39 // pred_check
          %p250 = pneg %p107
        $region50: #{tpu_custom_call.1} parent=39 // pred_check_branch
          %252 = sbr.rel (%p250) target = $region52
        $region51: #{tpu_custom_call.1} parent=39 // pred_region
          %253 = dma.done [#allocation6], 2048
        $region52: #{tpu_custom_call.1} parent=39 // pred_fallthru
          _
        %s254 = sand.u32 %s31, 1
        %s255 = scalar_lea.sflag [#allocation3], %s254
        %s256 = sand.u32 %s31, 1
        %s257 = smul.addr %s256, 72
        %s258 = scalar_lea.vmem [#allocation2], %s257
        %p259 = pneg %p44
        %p260 = pneg %p41
        %p261 = pneg %p65
        %p262 = pneg %p62
        %p263 = pneg %p86
        %p264 = pneg %p83
        %p265 = pneg %p107
        %p266 = pneg %p104
        %p267 = pneg %p128
        %p268 = pneg %p125
        %p269 = pneg %p154
        %p270 = pneg %p151
        %s271 = sand.u32 %s141, 1
        %s272 = scalar_lea.sflag [#allocation4], %s271
        %s273 = sand.u32 %s141, 1
        %s274 = smul.addr %s273, 144
        %s275 = scalar_lea.vmem [#allocation8], %s274
        %s276 = smul.u32 9, %s23
        %s277 = ssub.s32 17, %s276
        %p278 = scmp.lt.s32.totalorder %s277, 9
        %s279 = scalar_select %p278, %s277, 9
        %s280 = smul.u32 128, %s279
        %s281 = smul.u32 9, %s23
        %s282 = ssub.s32 17, %s281
        %p283 = scmp.lt.s32.totalorder %s282, 9
        %s284 = scalar_select %p283, %s282, 9
        %s285 = smul.u32 128, %s284
        %s286 = smul.u32 %s285, 2
        %v288 = vld [vmem:[%s241] sm:$0xff]
        %v289 = vld [vmem:[%s241 + $0x8] sm:$0xff]
        %v290 = vld [vmem:[%s241 + $0x10] sm:$0xff]
        %v291 = vld [vmem:[%s241 + $0x18] sm:$0xff]
        %v292 = vld [vmem:[%s241 + $0x20] sm:$0xff]
        %v293 = vld [vmem:[%s241 + $0x28] sm:$0xff]
        %v294 = vld [vmem:[%s241 + $0x30] sm:$0xff]
        %v295 = vld [vmem:[%s241 + $0x38] sm:$0xff]
        %v296 = vld [vmem:[%s241 + $0x40] sm:$0xff]
        %297 = vadd.xlane.f32.xlu0 %v288
        %v298 = vpop.xlane.xlu0 %297
        %299 = vadd.xlane.f32.xlu0 %v289
        %v300 = vpop.xlane.xlu0 %299
        %301 = vadd.xlane.f32.xlu0 %v290
        %v302 = vpop.xlane.xlu0 %301
        %303 = vadd.xlane.f32.xlu0 %v291
        %v304 = vpop.xlane.xlu0 %303
        %305 = vadd.xlane.f32.xlu0 %v292
        %v306 = vpop.xlane.xlu0 %305
        %307 = vadd.xlane.f32.xlu0 %v293
        %v308 = vpop.xlane.xlu0 %307
        %309 = vadd.xlane.f32.xlu0 %v294
        %v310 = vpop.xlane.xlu0 %309
        %311 = vadd.xlane.f32.xlu0 %v295
        %v312 = vpop.xlane.xlu0 %311
        %313 = vadd.xlane.f32.xlu0 %v296
        %v314 = vpop.xlane.xlu0 %313
        %v315 = vrcp.pop 128.0
        %v316 = vmul.f32 %v298, %v315
        %v317 = vmul.f32 %v300, %v315
        %v318 = vmul.f32 %v302, %v315
        %v319 = vmul.f32 %v304, %v315
        %v320 = vmul.f32 %v306, %v315
        %v321 = vmul.f32 %v308, %v315
        %v322 = vmul.f32 %v310, %v315
        %v323 = vmul.f32 %v312, %v315
        %v324 = vmul.f32 %v314, %v315
        %v325 = vsub.f32 %v288, %v316
        %v326 = vsub.f32 %v289, %v317
        %v327 = vsub.f32 %v290, %v318
        %v328 = vsub.f32 %v291, %v319
        %v329 = vsub.f32 %v292, %v320
        %v330 = vsub.f32 %v293, %v321
        %v331 = vsub.f32 %v294, %v322
        %v332 = vsub.f32 %v295, %v323
        %v333 = vsub.f32 %v296, %v324
        %v334 = vmul.f32 %v325, %v325
        %v335 = vmul.f32 %v326, %v326
        %v336 = vmul.f32 %v327, %v327
        %v337 = vmul.f32 %v328, %v328
        %v338 = vmul.f32 %v329, %v329
        %v339 = vmul.f32 %v330, %v330
        %v340 = vmul.f32 %v331, %v331
        %v341 = vmul.f32 %v332, %v332
        %v342 = vmul.f32 %v333, %v333
        %343 = vadd.xlane.f32.xlu0 %v334
        %v344 = vpop.xlane.xlu0 %343
        %345 = vadd.xlane.f32.xlu0 %v335
        %v346 = vpop.xlane.xlu0 %345
        %347 = vadd.xlane.f32.xlu0 %v336
        %v348 = vpop.xlane.xlu0 %347
        %349 = vadd.xlane.f32.xlu0 %v337
        %v350 = vpop.xlane.xlu0 %349
        %351 = vadd.xlane.f32.xlu0 %v338
        %v352 = vpop.xlane.xlu0 %351
        %353 = vadd.xlane.f32.xlu0 %v339
        %v354 = vpop.xlane.xlu0 %353
        %355 = vadd.xlane.f32.xlu0 %v340
        %v356 = vpop.xlane.xlu0 %355
        %357 = vadd.xlane.f32.xlu0 %v341
        %v358 = vpop.xlane.xlu0 %357
        %359 = vadd.xlane.f32.xlu0 %v342
        %v360 = vpop.xlane.xlu0 %359
        %v361 = vmul.f32 %v344, %v315
        %v362 = vmul.f32 %v346, %v315
        %v363 = vmul.f32 %v348, %v315
        %v364 = vmul.f32 %v350, %v315
        %v365 = vmul.f32 %v352, %v315
        %v366 = vmul.f32 %v354, %v315
        %v367 = vmul.f32 %v356, %v315
        %v368 = vmul.f32 %v358, %v315
        %v369 = vmul.f32 %v360, %v315
        %v370 = vadd.f32 %v361, 1e-05
        %v371 = vadd.f32 %v362, 1e-05
        %v372 = vadd.f32 %v363, 1e-05
        %v373 = vadd.f32 %v364, 1e-05
        %v374 = vadd.f32 %v365, 1e-05
        %v375 = vadd.f32 %v366, 1e-05
        %v376 = vadd.f32 %v367, 1e-05
        %v377 = vadd.f32 %v368, 1e-05
        %v378 = vadd.f32 %v369, 1e-05
        %v379 = vrsqrt.pop %v370
        %v380 = vrsqrt.pop %v371
        %v381 = vrsqrt.pop %v372
        %v382 = vrsqrt.pop %v373
        %v383 = vrsqrt.pop %v374
        %v384 = vrsqrt.pop %v375
        %v385 = vrsqrt.pop %v376
        %v386 = vrsqrt.pop %v377
        %v387 = vrsqrt.pop %v378
        %v388 = vmul.f32 %v325, %v379
        %v389 = vmul.f32 %v326, %v380
        %v390 = vmul.f32 %v327, %v381
        %v391 = vmul.f32 %v328, %v382
        %v392 = vmul.f32 %v329, %v383
        %v393 = vmul.f32 %v330, %v384
        %v394 = vmul.f32 %v331, %v385
        %v395 = vmul.f32 %v332, %v386
        %v396 = vmul.f32 %v333, %v387
        %v397 = vld [vmem:[%s1] sm:$0x1]
        %v399 = vlaneseq
        %v400 = vshrl.u32 %v399, 7
        %v401 = vsub.s32 0, %v400
        %v402 = vrot.slane %v397, %v401
        %v404 = vmul.f32 %v388, %v402
        %v405 = vmul.f32 %v389, %v402
        %v406 = vmul.f32 %v390, %v402
        %v407 = vmul.f32 %v391, %v402
        %v408 = vmul.f32 %v392, %v402
        %v409 = vmul.f32 %v393, %v402
        %v410 = vmul.f32 %v394, %v402
        %v411 = vmul.f32 %v395, %v402
        %v412 = vmul.f32 %v396, %v402
        %v413 = vld [vmem:[#allocation5] sm:$0x1]
        %v415 = vlaneseq
        %v416 = vshrl.u32 %v415, 7
        %v417 = vsub.s32 0, %v416
        %v418 = vrot.slane %v413, %v417
        %v420 = vadd.f32 %v404, %v418
        %v421 = vadd.f32 %v405, %v418
        %v422 = vadd.f32 %v406, %v418
        %v423 = vadd.f32 %v407, %v418
        %v424 = vadd.f32 %v408, %v418
        %v425 = vadd.f32 %v409, %v418
        %v426 = vadd.f32 %v410, %v418
        %v427 = vadd.f32 %v411, %v418
        %v428 = vadd.f32 %v412, %v418
        %v429 = vpack.c.bf16 %v421, %v420
        %v430 = vpack.c.bf16 %v423, %v422
        %v431 = vpack.c.bf16 %v425, %v424
        %v432 = vpack.c.bf16 %v427, %v426
        %v433 = vpack.c.bf16 %v428, %v428
        %v434 = vld [vmem:[#allocation7] sm:$0xff]
        %v435 = vld [vmem:[#allocation7 + $0x8] sm:$0xff]
        %v436 = vld [vmem:[#allocation7 + $0x10] sm:$0xff]
        %v437 = vld [vmem:[#allocation7 + $0x18] sm:$0xff]
        %v438 = vld [vmem:[#allocation7 + $0x20] sm:$0xff]
        %v439 = vld [vmem:[#allocation7 + $0x28] sm:$0xff]
        %v440 = vld [vmem:[#allocation7 + $0x30] sm:$0xff]
        %v441 = vld [vmem:[#allocation7 + $0x38] sm:$0xff]
        %v442 = vld [vmem:[#allocation7 + $0x40] sm:$0xff]
        %v443 = vld [vmem:[#allocation7 + $0x48] sm:$0xff]
        %v444 = vld [vmem:[#allocation7 + $0x50] sm:$0xff]
        %v445 = vld [vmem:[#allocation7 + $0x58] sm:$0xff]
        %v446 = vld [vmem:[#allocation7 + $0x60] sm:$0xff]
        %v447 = vld [vmem:[#allocation7 + $0x68] sm:$0xff]
        %v448 = vld [vmem:[#allocation7 + $0x70] sm:$0xff]
        %v449 = vld [vmem:[#allocation7 + $0x78] sm:$0xff]
        %v450 = vld [vmem:[%s4] sm:$0x3]
        %v452 = vlaneseq
        %v453 = vshrl.u32 %v452, 7
        %v454 = vsub.s32 0, %v453
        %v455 = vrot.slane %v450, %v454
        %v456 = vlaneseq
        %v457 = vshrl.u32 %v456, 7
        %v458 = vsub.s32 1, %v457
        %v459 = vrot.slane %v450, %v458
        %v478 = vunpack.c.l.b16 %v434
        %v479 = vunpack.c.h.b16 %v434
        %v480 = vunpack.c.l.b16 %v435
        %v481 = vunpack.c.h.b16 %v435
        %v482 = vunpack.c.l.b16 %v436
        %v483 = vunpack.c.h.b16 %v436
        %v484 = vunpack.c.l.b16 %v437
        %v485 = vunpack.c.h.b16 %v437
        %v486 = vunpack.c.l.b16 %v438
        %v487 = vunpack.c.h.b16 %v438
        %v488 = vunpack.c.l.b16 %v439
        %v489 = vunpack.c.h.b16 %v439
        %v490 = vunpack.c.l.b16 %v440
        %v491 = vunpack.c.h.b16 %v440
        %v492 = vunpack.c.l.b16 %v441
        %v493 = vunpack.c.h.b16 %v441
        %v494 = vunpack.c.l.b16 %v442
        %v495 = vunpack.c.h.b16 %v442
        %v496 = vunpack.c.l.b16 %v443
        %v497 = vunpack.c.h.b16 %v443
        %v498 = vunpack.c.l.b16 %v444
        %v499 = vunpack.c.h.b16 %v444
        %v500 = vunpack.c.l.b16 %v445
        %v501 = vunpack.c.h.b16 %v445
        %v502 = vunpack.c.l.b16 %v446
        %v503 = vunpack.c.h.b16 %v446
        %v504 = vunpack.c.l.b16 %v447
        %v505 = vunpack.c.h.b16 %v447
        %v506 = vunpack.c.l.b16 %v448
        %v507 = vunpack.c.h.b16 %v448
        %v508 = vunpack.c.l.b16 %v449
        %v509 = vunpack.c.h.b16 %v449
        %v510 = vpack.c.b16 %v480, %v478
        %v511 = vpack.c.b16 %v481, %v479
        %v512 = vpack.c.b16 %v484, %v482
        %v513 = vpack.c.b16 %v485, %v483
        %v514 = vpack.c.b16 %v488, %v486
        %v515 = vpack.c.b16 %v489, %v487
        %v516 = vpack.c.b16 %v492, %v490
        %v517 = vpack.c.b16 %v493, %v491
        %v518 = vpack.c.b16 %v496, %v494
        %v519 = vpack.c.b16 %v497, %v495
        %v520 = vpack.c.b16 %v500, %v498
        %v521 = vpack.c.b16 %v501, %v499
        %v522 = vpack.c.b16 %v504, %v502
        %v523 = vpack.c.b16 %v505, %v503
        %v524 = vpack.c.b16 %v508, %v506
        %v525 = vpack.c.b16 %v509, %v507
        %542 = vmatprep.subr.bf16.mxu0 %v525
        %543 = vmatpush1.bf16.msra.mxu0 %v524
        %544 = vmatprep.subr.bf16.mxu0 %v523
        %545 = vmatpush1.bf16.msra.mxu0 %v522
        %546 = vmatprep.subr.bf16.mxu0 %v521
        %547 = vmatpush1.bf16.msra.mxu0 %v520
        %548 = vmatprep.subr.bf16.mxu0 %v519
        %549 = vmatpush1.bf16.msra.mxu0 %v518
        %550 = vmatprep.subr.bf16.mxu0 %v517
        %551 = vmatpush1.bf16.msra.mxu0 %v516
        %552 = vmatprep.subr.bf16.mxu0 %v515
        %553 = vmatpush1.bf16.msra.mxu0 %v514
        %554 = vmatprep.subr.bf16.mxu0 %v513
        %555 = vmatpush1.bf16.msra.mxu0 %v512
        %556 = vmatprep.subr.bf16.mxu0 %v511
        %557 = vmatpush1.bf16.msra.mxu0 %v510
        %558 = vmatprep.subr.bf16.mxu0 0
        %559 = vmatpush2.bf16.msra.mxu0 0
        %560 = vmatprep.subr.bf16.mxu0 0
        %561 = vmatpush2.bf16.msra.mxu0 0
        %562 = vmatprep.subr.bf16.mxu0 0
        %563 = vmatpush2.bf16.msra.mxu0 0
        %564 = vmatprep.subr.bf16.mxu0 0
        %565 = vmatpush2.bf16.msra.mxu0 0
        %566 = vmatprep.subr.bf16.mxu0 0
        %567 = vmatpush2.bf16.msra.mxu0 0
        %568 = vmatprep.subr.bf16.mxu0 0
        %569 = vmatpush2.bf16.msra.mxu0 0
        %570 = vmatprep.subr.bf16.mxu0 0
        %571 = vmatpush2.bf16.msra.mxu0 0
        %572 = vmatprep.subr.bf16.mxu0 0
        %573 = vmatpush2.bf16.msra.mxu0 0
        %574 = vmatprep.mubr.bf16.mxu0 0
        %575 = vmatmul.mubr.bf16.gmra.mxu0 %v429
        %v576 = vpop.f32.mrf.mxu0
        %v577 = vadd.f32 %v455, %v576
        %v578 = vpop.f32.mrf.mxu0
        %v579 = vadd.f32 %v459, %v578
        %v580 = vpop.f32.mrf.mxu0
        %v581 = vadd.f32 %v455, %v580
        %v582 = vpop.f32.mrf.mxu0
        %v583 = vadd.f32 %v459, %v582
        %584 = vmatprep.mubr.bf16.mxu0 0
        %585 = vmatmul.mubr.bf16.gmra.mxu0 %v430
        %v586 = vpop.f32.mrf.mxu0
        %v587 = vadd.f32 %v455, %v586
        %v588 = vpop.f32.mrf.mxu0
        %v589 = vadd.f32 %v459, %v588
        %v590 = vpop.f32.mrf.mxu0
        %v591 = vadd.f32 %v455, %v590
        %v592 = vpop.f32.mrf.mxu0
        %v593 = vadd.f32 %v459, %v592
        %594 = vmatprep.mubr.bf16.mxu0 0
        %595 = vmatmul.mubr.bf16.gmra.mxu0 %v431
        %v596 = vpop.f32.mrf.mxu0
        %v597 = vadd.f32 %v455, %v596
        %v598 = vpop.f32.mrf.mxu0
        %v599 = vadd.f32 %v459, %v598
        %v600 = vpop.f32.mrf.mxu0
        %v601 = vadd.f32 %v455, %v600
        %v602 = vpop.f32.mrf.mxu0
        %v603 = vadd.f32 %v459, %v602
        %604 = vmatprep.mubr.bf16.mxu0 0
        %605 = vmatmul.mubr.bf16.gmra.mxu0 %v432
        %v606 = vpop.f32.mrf.mxu0
        %v607 = vadd.f32 %v455, %v606
        %v608 = vpop.f32.mrf.mxu0
        %v609 = vadd.f32 %v459, %v608
        %v610 = vpop.f32.mrf.mxu0
        %v611 = vadd.f32 %v455, %v610
        %v612 = vpop.f32.mrf.mxu0
        %v613 = vadd.f32 %v459, %v612
        %614 = vmatprep.mubr.bf16.mxu0 0
        %615 = vmatmul.mubr.bf16.gmra.mxu0 %v433
        %v616 = vpop.f32.mrf.mxu0
        %v617 = vadd.f32 %v455, %v616
        %v618 = vpop.f32.mrf.mxu0
        %v619 = vadd.f32 %v459, %v618
        %v620 = vpop.f32.mrf.mxu0
        %v621 = vpop.f32.mrf.mxu0
        %622 = vdwg.mxu0
        %623 = vst [vmem:[%s275] sm:$0xff] %v577
        %624 = vst [vmem:[%s275 + $0x8] sm:$0xff] %v579
        %625 = vst [vmem:[%s275 + $0x10] sm:$0xff] %v581
        %626 = vst [vmem:[%s275 + $0x18] sm:$0xff] %v583
        %627 = vst [vmem:[%s275 + $0x20] sm:$0xff] %v587
        %628 = vst [vmem:[%s275 + $0x28] sm:$0xff] %v589
        %629 = vst [vmem:[%s275 + $0x30] sm:$0xff] %v591
        %630 = vst [vmem:[%s275 + $0x38] sm:$0xff] %v593
        %631 = vst [vmem:[%s275 + $0x40] sm:$0xff] %v597
        %632 = vst [vmem:[%s275 + $0x48] sm:$0xff] %v599
        %633 = vst [vmem:[%s275 + $0x50] sm:$0xff] %v601
        %634 = vst [vmem:[%s275 + $0x58] sm:$0xff] %v603
        %635 = vst [vmem:[%s275 + $0x60] sm:$0xff] %v607
        %636 = vst [vmem:[%s275 + $0x68] sm:$0xff] %v609
        %637 = vst [vmem:[%s275 + $0x70] sm:$0xff] %v611
        %638 = vst [vmem:[%s275 + $0x78] sm:$0xff] %v613
        %639 = vst [vmem:[%s275 + $0x80] sm:$0xff] %v617
        %640 = vst [vmem:[%s275 + $0x88] sm:$0xff] %v619
        %s641 = sand.u32 %s141, 1
        %s642 = scalar_lea.sflag [#allocation4], %s641
        %s643 = sand.u32 %s141, 1
        %s644 = smul.addr %s643, 144
        %s645 = scalar_lea.vmem [#allocation8], %s644
        // Predicated region
        $region53: #{tpu_custom_call.1} parent=39 // pred_check
          %p646 = pneg %p151
        $region54: #{tpu_custom_call.1} parent=39 // pred_check_branch
          %648 = sbr.rel (%p646) target = $region56
        $region55: #{tpu_custom_call.1} parent=39 // pred_region
          %s649 = smul.u32 9, %s23
          %s650 = ssub.s32 17, %s649
          %p651 = scmp.lt.s32.totalorder %s650, 9
          %s652 = scalar_select %p651, %s650, 9
          %s653 = smul.u32 128, %s652
          %s654 = smul.u32 %s653, 2
          %s656 = ssub.s32 2304, %s654
          %657 = vsyncadd %s642, %s656
          %p658 = scmp.ne.s32.totalorder 0, %s654
          %s659 = smul.addr %s649, 2
          %s660 = smul.addr %s659, 128
          %s661 = scalar_lea.hbm %s5, %s660
          %s662 = smul.u32 16, %s652
          %s663 = sshll.u32 %s645, 4
          %s664 = int_to_ptr.vmem [resolvable:$true] %s663
          %s665 = sshll.u32 %s662, 4
          %669 = dma.vmem_to_hbm [thread:$0]  (%p658), %s664, %s665, %s661, %s642, 256, 256, 16
        $region56: #{tpu_custom_call.1} parent=39 // pred_fallthru
          _
      $region40: #{tpu_custom_call.1} parent=5 // pred_fallthru
        _
      %p670 = scmp.le.s32.totalorder 2, %s18
      // Predicated region
      $region57: #{tpu_custom_call.1} parent=5 // pred_check
        %p671 = pneg %p670
      $region58: #{tpu_custom_call.1} parent=5 // pred_check_branch
        %673 = sbr.rel (%p671) target = $region60
      $region59: #{tpu_custom_call.1} parent=5 // pred_region
        %s674 = ssub.s32 %s18, 2
        // Predicated region
        $region61: #{tpu_custom_call.1} parent=59 // pred_check
          %p675 = pneg %p157
        $region62: #{tpu_custom_call.1} parent=59 // pred_check_branch
          %677 = sbr.rel (%p675) target = $region64
        $region63: #{tpu_custom_call.1} parent=59 // pred_region
          %s678 = sand.u32 %s142, 1
          %s679 = scalar_lea.sflag [#allocation4], %s678
          %s680 = sand.u32 %s142, 1
          %s681 = smul.addr %s680, 144
          %s682 = scalar_lea.vmem [#allocation8], %s681
          %683 = dma.done %s679, 2304
        $region64: #{tpu_custom_call.1} parent=59 // pred_fallthru
          _
      $region60: #{tpu_custom_call.1} parent=5 // pred_fallthru
        _
    $region6: #{tpu_custom_call.1} parent=1 // loop_footer
      %s22 = sadd.s32 1, %s18
    $region7: #{tpu_custom_call.1} parent=1 // loop_footer_branch
      %17 = sbr.rel target = $region3
    $region8: #{tpu_custom_call.1} parent=1 // loop_exit
      _
    %684 = vsyncpa [#allocation3], 1
    %s685 = scalar_lea.sflag [#allocation3], 1
    %686 = vsyncpa %s685, 1
    %687 = vsyncpa [#allocation6], 1
    %688 = vsyncpa [#allocation4], 1
    %s689 = scalar_lea.sflag [#allocation4], 1
    %690 = vsyncpa %s689, 1

</llo_original>
